<compile_context>
chip_gen: v7x
topology: tpu7x:2x2x1
jax: 0.10.0
libtpu: 0.0.40
codegen_flags: <defaults>
</compile_context>

<pallas_src>
import jax
import jax.numpy as jnp
from jax.experimental import pallas as pl
from jax.experimental.pallas import tpu as pltpu


def _pick_batch_tile(B):
    # Prefer >= 2 batch tiles (v7x has 2 TensorCores; only the leading
    # "parallel" grid axis is sharded across them), tile <= 256 (v6e MXU fill).
    for bt in (256, 128, 64, 32, 16, 8):
        if B % bt == 0 and B // bt >= 2:
            return bt
    return B


def _pick_time_tile(T, max_tt):
    tt = min(T, max_tt)
    while T % tt:
        tt -= 1
    return tt


def gru_generator_kernel(noise_ref, h0_ref,
                         w1_ref, b1_ref,
                         wih_ref, bih_ref,
                         whh_ref, bhh_ref,
                         w2_ref, b2_ref,
                         out_ref, h_ref,
                         gi_ref, hacc_ref):
    """One (batch_tile, time_chunk) grid cell.

    noise_ref: (TT, BT, in_dim) this chunk's noise (f32)
    h0_ref:    (BT, H)          initial hidden state for this batch tile
    h_ref:     (BT, H) output   doubles as the recurrent carry (resident over tc)
    out_ref:   (TT, BT, out_dim)
    gi_ref:    VMEM scratch (TT, BT, 3H) f32  -- hoisted x-path pre-activations
    hacc_ref:  VMEM scratch (TT, BT, H)  f32  -- per-step h for the fc2 epilogue
    """
    tc = pl.program_id(1)
    TT, BT, H = hacc_ref.shape
    in_dim = noise_ref.shape[-1]
    out_dim = out_ref.shape[-1]

    # Load the initial hidden state into the resident carry at the first chunk.
    @pl.when(tc == 0)
    def _():
        h_ref[...] = h0_ref[...]

    # ---- time-parallel prologue (big-M MXU matmuls, off the serial chain) ----
    # fc1 + ReLU over all TT*BT rows, then the x-path gate pre-activations.
    noise2d = noise_ref[...].reshape(TT * BT, in_dim).astype(jnp.bfloat16)
    x = jnp.dot(noise2d, w1_ref[...],
                preferred_element_type=jnp.float32) + b1_ref[...]
    x = jnp.maximum(x, 0.0)
    gi = jnp.dot(x.astype(jnp.bfloat16), wih_ref[...],
                 preferred_element_type=jnp.float32) + bih_ref[...]
    gi_ref[...] = gi.reshape(TT, BT, 3 * H)

    # ---- serial recurrence: only h @ W_hh + gate math per step ----
    whh = whh_ref[...]
    bhh = bhh_ref[...]
    h = h_ref[...]                                            # f32 carry
    for t in range(TT):                                       # TT is static
        gh = jnp.dot(h.astype(jnp.bfloat16), whh,
                     preferred_element_type=jnp.float32) + bhh
        g = gi_ref[t]                                         # (BT, 3H)
        r = jax.nn.sigmoid(g[:, 0:H] + gh[:, 0:H])
        z = jax.nn.sigmoid(g[:, H:2 * H] + gh[:, H:2 * H])
        n = jnp.tanh(g[:, 2 * H:3 * H] + r * gh[:, 2 * H:3 * H])
        h = (1.0 - z) * n + z * h
        hacc_ref[t] = h
    h_ref[...] = h                                            # carry to next chunk

    # ---- time-parallel epilogue: deferred fc2 as one big-M matmul ----
    hc = hacc_ref[...].reshape(TT * BT, H).astype(jnp.bfloat16)
    out = jnp.dot(hc, w2_ref[...],
                  preferred_element_type=jnp.float32) + b2_ref[...]
    out_ref[...] = out.reshape(TT, BT, out_dim)


def lstm_generator_sequence(noise_seq, hidden, packed, *,
                            batch_tile=None, time_tile=8,
                            vmem_limit_bytes=None):
    """noise_seq: (T, B, in_dim) f32, hidden: (B, H) f32
       -> (outputs (T, B, out_dim) f32, final hidden (B, H) f32)."""
    T, B, in_dim = noise_seq.shape
    H = hidden.shape[-1]
    out_dim = packed["w2"].shape[1]

    # Gate slices g[:, k*H:(k+1)*H] are only lane-aligned when H % 128 == 0;
    # violating it silently costs 2-3x on the recurrent critical path.
    assert H % 128 == 0, "rnn_hidden_dim must be a multiple of 128"
    # out_dim is best kept a multiple of 128 for an unmasked lane-dense store
    # (works either way since the out_dim block dim is full-extent).

    if batch_tile is None:
        batch_tile = _pick_batch_tile(B)
    assert B % batch_tile == 0, "batch must be divisible by batch_tile"
    assert batch_tile % 8 == 0 or batch_tile == B, \
        "batch_tile should be a multiple of 8 (sublane alignment)"
    nb = B // batch_tile

    TT = _pick_time_tile(T, time_tile)
    ntc = T // TT

    def resident(arr):
        # Full-array block whose index never changes -> stays in VMEM for the
        # whole grid (no per-step weight reload).
        return pl.BlockSpec(arr.shape, lambda b, tc: (0,) * arr.ndim)

    in_specs = [
        pl.BlockSpec((TT, batch_tile, in_dim), lambda b, tc: (tc, b, 0)),  # noise chunk
        pl.BlockSpec((batch_tile, H), lambda b, tc: (b, 0)),               # h0
        resident(packed["w1"]), resident(packed["b1"]),
        resident(packed["w_ih"]), resident(packed["b_ih"]),
        resident(packed["w_hh"]), resident(packed["b_hh"]),
        resident(packed["w2"]), resident(packed["b2"]),
    ]
    out_specs = (
        pl.BlockSpec((TT, batch_tile, out_dim), lambda b, tc: (tc, b, 0)),  # outputs
        pl.BlockSpec((batch_tile, H), lambda b, tc: (b, 0)),                # final h (carry)
    )
    out_shape = (jax.ShapeDtypeStruct((T, B, out_dim), jnp.float32),
                 jax.ShapeDtypeStruct((B, H), jnp.float32))
    scratch_shapes = [
        pltpu.VMEM((TT, batch_tile, 3 * H), jnp.float32),   # gi (hoisted x-path gates)
        pltpu.VMEM((TT, batch_tile, H), jnp.float32),       # per-step h for fc2 epilogue
    ]

    # For large H (>= 1024) the double-buffered resident weights can approach
    # v7x's 64 MiB VMEM; raise vmem_limit_bytes explicitly in that regime.
    cp_kwargs = dict(dimension_semantics=("parallel", "arbitrary"))
    if vmem_limit_bytes is not None:
        cp_kwargs["vmem_limit_bytes"] = vmem_limit_bytes

    return pl.pallas_call(
        gru_generator_kernel,
        grid=(nb, ntc),
        in_specs=in_specs,
        out_specs=out_specs,
        out_shape=out_shape,
        scratch_shapes=scratch_shapes,
        compiler_params=pltpu.CompilerParams(**cp_kwargs),
    )(noise_seq, hidden,
      packed["w1"], packed["b1"],
      packed["w_ih"], packed["b_ih"],
      packed["w_hh"], packed["b_hh"],
      packed["w2"], packed["b2"])


def lstm_generator_forward(noise, hidden, packed):
    """Module forward: noise (B, in_dim), hidden (B, H) -> (out (B, out_dim), h_new)."""
    out_seq, h_new = lstm_generator_sequence(noise[None], hidden, packed)
    return out_seq[0], h_new


def init_params(key, in_dim, hidden_dim, out_dim):
    """Deterministic synthetic parameters (uniform, PyTorch-like fan_in scaling)."""
    ks = jax.random.split(key, 8)

    def u(k, shape, fan_in):
        bound = 1.0 / jnp.sqrt(float(fan_in))
        return jax.random.uniform(k, shape, jnp.float32, -bound, bound)

    return {
        "w1": u(ks[0], (in_dim, hidden_dim), in_dim),
        "b1": u(ks[1], (1, hidden_dim), in_dim),
        "w_ih": u(ks[2], (hidden_dim, 3 * hidden_dim), hidden_dim),
        "w_hh": u(ks[3], (hidden_dim, 3 * hidden_dim), hidden_dim),
        "b_ih": u(ks[4], (1, 3 * hidden_dim), hidden_dim),
        "b_hh": u(ks[5], (1, 3 * hidden_dim), hidden_dim),
        "w2": u(ks[6], (hidden_dim, out_dim), hidden_dim),
        "b2": u(ks[7], (1, out_dim), hidden_dim),
    }


def pack_params(p):
    """Host-side packing: weight matrices cast to bfloat16 (f32 accumulation
    in the kernel); biases stay f32. No gate fusion / padding needed."""
    return {
        "w1": p["w1"].astype(jnp.bfloat16),
        "b1": p["b1"],
        "w_ih": p["w_ih"].astype(jnp.bfloat16),
        "b_ih": p["b_ih"],
        "w_hh": p["w_hh"].astype(jnp.bfloat16),
        "b_hh": p["b_hh"],
        "w2": p["w2"].astype(jnp.bfloat16),
        "b2": p["b2"],
    }


def reference_step(noise, h, p):
    """Pure-JAX reference (PyTorch GRUCell semantics; bf16 weights, f32
    accumulate to mirror the kernel's numerics)."""
    H = p["w_hh"].shape[0]

    def dot(a, w):
        return jnp.dot(a.astype(jnp.bfloat16), w.astype(jnp.bfloat16),
                       preferred_element_type=jnp.float32)

    x = jnp.maximum(dot(noise, p["w1"]) + p["b1"], 0.0)
    gi = dot(x, p["w_ih"]) + p["b_ih"]
    gh = dot(h, p["w_hh"]) + p["b_hh"]
    r = jax.nn.sigmoid(gi[:, :H] + gh[:, :H])
    z = jax.nn.sigmoid(gi[:, H:2 * H] + gh[:, H:2 * H])
    n = jnp.tanh(gi[:, 2 * H:] + r * gh[:, 2 * H:])
    h_new = (1.0 - z) * n + z * h
    return dot(h_new, p["w2"]) + p["b2"], h_new


if __name__ == "__main__":
    B, T, IN_DIM, HIDDEN, OUT_DIM = 16, 16, 64, 128, 256

    key = jax.random.PRNGKey(0)
    k_noise, k_hidden, k_params = jax.random.split(key, 3)

    noise_seq = jax.random.normal(k_noise, (T, B, IN_DIM), jnp.float32)
    hidden = jax.random.normal(k_hidden, (B, HIDDEN), jnp.float32)
    params = init_params(k_params, IN_DIM, HIDDEN, OUT_DIM)
    packed = pack_params(params)

    # --- single step: matches the PyTorch module's forward(noise, hidden) ---
    out1, h1 = lstm_generator_forward(noise_seq[0], hidden, packed)
    jax.block_until_ready((out1, h1))
    ref_out1, ref_h1 = reference_step(noise_seq[0], hidden, params)
    assert out1.shape == (B, OUT_DIM) and h1.shape == (B, HIDDEN)
    assert jnp.allclose(out1, ref_out1, atol=2e-2, rtol=2e-2)
    assert jnp.allclose(h1, ref_h1, atol=2e-2, rtol=2e-2)

    # --- multi-step: 2 batch tiles x 2 time chunks, recurrence inside kernel ---
    out_seq, h_T = lstm_generator_sequence(noise_seq, hidden, packed)
    jax.block_until_ready((out_seq, h_T))

    h_ref = hidden
    ref_outs = []
    for t in range(T):
        o, h_ref = reference_step(noise_seq[t], h_ref, params)
        ref_outs.append(o)
    ref_out_seq = jnp.stack(ref_outs)
    assert out_seq.shape == (T, B, OUT_DIM) and h_T.shape == (B, HIDDEN)
    assert jnp.allclose(out_seq, ref_out_seq, atol=2e-2, rtol=2e-2)
    assert jnp.allclose(h_T, h_ref, atol=2e-2, rtol=2e-2)

    print("KERNEL_OK")
</pallas_src>

<mosaic_0001>
module attributes {stable_mosaic.version = 11 : i64} {
  func.func @gru_generator_kernel(%arg0: i32, %arg1: i32, %arg2: memref<1x8x64xf32, #tpu.memory_space<vmem>>, %arg3: memref<8x128xf32, #tpu.memory_space<vmem>>, %arg4: memref<64x128xbf16, #tpu.memory_space<vmem>>, %arg5: memref<1x128xf32, #tpu.memory_space<vmem>>, %arg6: memref<128x384xbf16, #tpu.memory_space<vmem>>, %arg7: memref<1x384xf32, #tpu.memory_space<vmem>>, %arg8: memref<128x384xbf16, #tpu.memory_space<vmem>>, %arg9: memref<1x384xf32, #tpu.memory_space<vmem>>, %arg10: memref<128x256xbf16, #tpu.memory_space<vmem>>, %arg11: memref<1x256xf32, #tpu.memory_space<vmem>>, %arg12: memref<1x8x256xf32, #tpu.memory_space<vmem>>, %arg13: memref<8x128xf32, #tpu.memory_space<vmem>>, %arg14: memref<1x8x384xf32, #tpu.memory_space<vmem>>, %arg15: memref<1x8x128xf32, #tpu.memory_space<vmem>>) attributes {dimension_semantics = [#tpu.dimension_semantics<parallel>, #tpu.dimension_semantics<arbitrary>], iteration_bounds = array<i64: 2, 1>, scalar_prefetch = 0 : i64, scratch_operands = 2 : i64, tpu.core_type = #tpu.core_type<tc>, window_params = [{transform_indices = @transform_0, window_bounds = array<i64: 1, 8, 64>}, {transform_indices = @transform_1, window_bounds = array<i64: 8, 128>}, {pipeline_mode = #tpu.pipeline_mode<synchronous>, transform_indices = @transform_2, window_bounds = array<i64: 64, 128>}, {pipeline_mode = #tpu.pipeline_mode<synchronous>, transform_indices = @transform_3, window_bounds = array<i64: 1, 128>}, {pipeline_mode = #tpu.pipeline_mode<synchronous>, transform_indices = @transform_4, window_bounds = array<i64: 128, 384>}, {pipeline_mode = #tpu.pipeline_mode<synchronous>, transform_indices = @transform_5, window_bounds = array<i64: 1, 384>}, {pipeline_mode = #tpu.pipeline_mode<synchronous>, transform_indices = @transform_6, window_bounds = array<i64: 128, 384>}, {pipeline_mode = #tpu.pipeline_mode<synchronous>, transform_indices = @transform_7, window_bounds = array<i64: 1, 384>}, {pipeline_mode = #tpu.pipeline_mode<synchronous>, transform_indices = @transform_8, window_bounds = array<i64: 128, 256>}, {pipeline_mode = #tpu.pipeline_mode<synchronous>, transform_indices = @transform_9, window_bounds = array<i64: 1, 256>}, {transform_indices = @transform_10, window_bounds = array<i64: 1, 8, 256>}, {transform_indices = @transform_11, window_bounds = array<i64: 8, 128>}]} {
    %c0_i32 = arith.constant 0 : i32
    %0 = arith.cmpi eq, %arg1, %c0_i32 : i32
    %1 = arith.extui %0 : i1 to i32
    %c0_i32_0 = arith.constant 0 : i32
    %2 = arith.cmpi ne, %1, %c0_i32_0 : i32
    scf.if %2 {
      %c0_45 = arith.constant 0 : index
      %c0_46 = arith.constant 0 : index
      %70 = vector.load %arg3[%c0_45, %c0_46] : memref<8x128xf32, #tpu.memory_space<vmem>>, vector<8x128xf32>
      %c0_47 = arith.constant 0 : index
      %c0_48 = arith.constant 0 : index
      %71 = vector.load %arg13[%c0_47, %c0_48] : memref<8x128xf32, #tpu.memory_space<vmem>>, vector<8x128xf32>
      tpu.vector_store %arg13[%c0_47, %c0_48], %70 {strides = array<i32>} : memref<8x128xf32, #tpu.memory_space<vmem>>, vector<8x128xf32>,
    } else {
    }
    %c0 = arith.constant 0 : index
    %c0_1 = arith.constant 0 : index
    %c0_2 = arith.constant 0 : index
    %3 = vector.load %arg2[%c0, %c0_1, %c0_2] : memref<1x8x64xf32, #tpu.memory_space<vmem>>, vector<1x8x64xf32>
    %4 = vector.shape_cast %3 : vector<1x8x64xf32> to vector<8x64xf32>
    %5 = arith.truncf %4 : vector<8x64xf32> to vector<8x64xbf16>
    %c0_3 = arith.constant 0 : index
    %c0_4 = arith.constant 0 : index
    %6 = vector.load %arg4[%c0_3, %c0_4] : memref<64x128xbf16, #tpu.memory_space<vmem>>, vector<64x128xbf16>
    %cst = arith.constant dense<0.000000e+00> : vector<8x128xf32>
    %7 = tpu.matmul %5, %6, %cst {dimension_numbers = #tpu.dot_dimension_numbers<[1], [0], [0], [1], [0, 0, 1, 1], [], []>} : vector<8x64xbf16>, vector<64x128xbf16>, vector<8x128xf32> -> vector<8x128xf32>
    %c0_5 = arith.constant 0 : index
    %c0_6 = arith.constant 0 : index
    %8 = vector.load %arg5[%c0_5, %c0_6] : memref<1x128xf32, #tpu.memory_space<vmem>>, vector<1x128xf32>
    %9 = vector.broadcast %8 : vector<1x128xf32> to vector<8x128xf32>
    %10 = arith.addf %7, %9 : vector<8x128xf32>
    %cst_7 = arith.constant 0.000000e+00 : f32
    %11 = vector.broadcast %cst_7 : f32 to vector<8x128xf32>
    %12 = arith.maximumf %10, %11 : vector<8x128xf32>
    %13 = arith.truncf %12 : vector<8x128xf32> to vector<8x128xbf16>
    %c0_8 = arith.constant 0 : index
    %c0_9 = arith.constant 0 : index
    %14 = vector.load %arg6[%c0_8, %c0_9] : memref<128x384xbf16, #tpu.memory_space<vmem>>, vector<128x384xbf16>
    %cst_10 = arith.constant dense<0.000000e+00> : vector<8x384xf32>
    %15 = tpu.matmul %13, %14, %cst_10 {dimension_numbers = #tpu.dot_dimension_numbers<[1], [0], [0], [1], [0, 0, 1, 1], [], []>} : vector<8x128xbf16>, vector<128x384xbf16>, vector<8x384xf32> -> vector<8x384xf32>
    %c0_11 = arith.constant 0 : index
    %c0_12 = arith.constant 0 : index
    %16 = vector.load %arg7[%c0_11, %c0_12] : memref<1x384xf32, #tpu.memory_space<vmem>>, vector<1x384xf32>
    %17 = vector.broadcast %16 : vector<1x384xf32> to vector<8x384xf32>
    %18 = arith.addf %15, %17 : vector<8x384xf32>
    %19 = vector.shape_cast %18 : vector<8x384xf32> to vector<1x8x384xf32>
    %c0_13 = arith.constant 0 : index
    %c0_14 = arith.constant 0 : index
    %c0_15 = arith.constant 0 : index
    %20 = vector.load %arg14[%c0_13, %c0_14, %c0_15] : memref<1x8x384xf32, #tpu.memory_space<vmem>>, vector<1x8x384xf32>
    tpu.vector_store %arg14[%c0_13, %c0_14, %c0_15], %19 {strides = array<i32>} : memref<1x8x384xf32, #tpu.memory_space<vmem>>, vector<1x8x384xf32>,
    %c0_16 = arith.constant 0 : index
    %c0_17 = arith.constant 0 : index
    %21 = vector.load %arg8[%c0_16, %c0_17] : memref<128x384xbf16, #tpu.memory_space<vmem>>, vector<128x384xbf16>
    %c0_18 = arith.constant 0 : index
    %c0_19 = arith.constant 0 : index
    %22 = vector.load %arg9[%c0_18, %c0_19] : memref<1x384xf32, #tpu.memory_space<vmem>>, vector<1x384xf32>
    %c0_20 = arith.constant 0 : index
    %c0_21 = arith.constant 0 : index
    %23 = vector.load %arg13[%c0_20, %c0_21] : memref<8x128xf32, #tpu.memory_space<vmem>>, vector<8x128xf32>
    %24 = arith.truncf %23 : vector<8x128xf32> to vector<8x128xbf16>
    %cst_22 = arith.constant dense<0.000000e+00> : vector<8x384xf32>
    %25 = tpu.matmul %24, %21, %cst_22 {dimension_numbers = #tpu.dot_dimension_numbers<[1], [0], [0], [1], [0, 0, 1, 1], [], []>} : vector<8x128xbf16>, vector<128x384xbf16>, vector<8x384xf32> -> vector<8x384xf32>
    %26 = vector.broadcast %22 : vector<1x384xf32> to vector<8x384xf32>
    %27 = arith.addf %25, %26 : vector<8x384xf32>
    %c0_23 = arith.constant 0 : index
    %c0_24 = arith.constant 0 : index
    %c0_25 = arith.constant 0 : index
    %28 = vector.load %arg14[%c0_23, %c0_24, %c0_25] : memref<1x8x384xf32, #tpu.memory_space<vmem>>, vector<1x8x384xf32>
    %29 = vector.shape_cast %28 : vector<1x8x384xf32> to vector<8x384xf32>
    %30 = vector.extract_strided_slice %29 {offsets = [0, 0], sizes = [8, 128], strides = [1, 1]} : vector<8x384xf32> to vector<8x128xf32>
    %31 = vector.extract_strided_slice %27 {offsets = [0, 0], sizes = [8, 128], strides = [1, 1]} : vector<8x384xf32> to vector<8x128xf32>
    %32 = arith.addf %30, %31 : vector<8x128xf32>
    %33 = arith.negf %32 : vector<8x128xf32>
    %34 = math.exp %33 : vector<8x128xf32>
    %cst_26 = arith.constant 1.000000e+00 : f32
    %35 = vector.broadcast %cst_26 : f32 to vector<8x128xf32>
    %36 = arith.addf %35, %34 : vector<8x128xf32>
    %37 = arith.divf %35, %36 : vector<8x128xf32>
    %38 = vector.extract_strided_slice %29 {offsets = [0, 128], sizes = [8, 128], strides = [1, 1]} : vector<8x384xf32> to vector<8x128xf32>
    %39 = vector.extract_strided_slice %27 {offsets = [0, 128], sizes = [8, 128], strides = [1, 1]} : vector<8x384xf32> to vector<8x128xf32>
    %40 = arith.addf %38, %39 : vector<8x128xf32>
    %41 = arith.negf %40 : vector<8x128xf32>
    %42 = math.exp %41 : vector<8x128xf32>
    %cst_27 = arith.constant 1.000000e+00 : f32
    %43 = vector.broadcast %cst_27 : f32 to vector<8x128xf32>
    %44 = arith.addf %43, %42 : vector<8x128xf32>
    %45 = arith.divf %43, %44 : vector<8x128xf32>
    %46 = vector.extract_strided_slice %29 {offsets = [0, 256], sizes = [8, 128], strides = [1, 1]} : vector<8x384xf32> to vector<8x128xf32>
    %47 = vector.extract_strided_slice %27 {offsets = [0, 256], sizes = [8, 128], strides = [1, 1]} : vector<8x384xf32> to vector<8x128xf32>
    %48 = arith.mulf %37, %47 : vector<8x128xf32>
    %49 = arith.addf %46, %48 : vector<8x128xf32>
    %50 = math.tanh %49 : vector<8x128xf32>
    %cst_28 = arith.constant 1.000000e+00 : f32
    %51 = vector.broadcast %cst_28 : f32 to vector<8x128xf32>
    %52 = arith.subf %51, %45 : vector<8x128xf32>
    %53 = arith.mulf %52, %50 : vector<8x128xf32>
    %54 = arith.mulf %45, %23 : vector<8x128xf32>
    %55 = arith.addf %53, %54 : vector<8x128xf32>
    %c0_29 = arith.constant 0 : index
    %c0_30 = arith.constant 0 : index
    %c0_31 = arith.constant 0 : index
    %56 = vector.load %arg15[%c0_29, %c0_30, %c0_31] : memref<1x8x128xf32, #tpu.memory_space<vmem>>, vector<1x8x128xf32>
    %57 = vector.shape_cast %56 : vector<1x8x128xf32> to vector<8x128xf32>
    %58 = vector.shape_cast %55 : vector<8x128xf32> to vector<1x8x128xf32>
    tpu.vector_store %arg15[%c0_29, %c0_30, %c0_31], %58 {strides = array<i32>} : memref<1x8x128xf32, #tpu.memory_space<vmem>>, vector<1x8x128xf32>,
    %c0_32 = arith.constant 0 : index
    %c0_33 = arith.constant 0 : index
    %59 = vector.load %arg13[%c0_32, %c0_33] : memref<8x128xf32, #tpu.memory_space<vmem>>, vector<8x128xf32>
    tpu.vector_store %arg13[%c0_32, %c0_33], %55 {strides = array<i32>} : memref<8x128xf32, #tpu.memory_space<vmem>>, vector<8x128xf32>,
    %c0_34 = arith.constant 0 : index
    %c0_35 = arith.constant 0 : index
    %c0_36 = arith.constant 0 : index
    %60 = vector.load %arg15[%c0_34, %c0_35, %c0_36] : memref<1x8x128xf32, #tpu.memory_space<vmem>>, vector<1x8x128xf32>
    %61 = vector.shape_cast %60 : vector<1x8x128xf32> to vector<8x128xf32>
    %62 = arith.truncf %61 : vector<8x128xf32> to vector<8x128xbf16>
    %c0_37 = arith.constant 0 : index
    %c0_38 = arith.constant 0 : index
    %63 = vector.load %arg10[%c0_37, %c0_38] : memref<128x256xbf16, #tpu.memory_space<vmem>>, vector<128x256xbf16>
    %cst_39 = arith.constant dense<0.000000e+00> : vector<8x256xf32>
    %64 = tpu.matmul %62, %63, %cst_39 {dimension_numbers = #tpu.dot_dimension_numbers<[1], [0], [0], [1], [0, 0, 1, 1], [], []>} : vector<8x128xbf16>, vector<128x256xbf16>, vector<8x256xf32> -> vector<8x256xf32>
    %c0_40 = arith.constant 0 : index
    %c0_41 = arith.constant 0 : index
    %65 = vector.load %arg11[%c0_40, %c0_41] : memref<1x256xf32, #tpu.memory_space<vmem>>, vector<1x256xf32>
    %66 = vector.broadcast %65 : vector<1x256xf32> to vector<8x256xf32>
    %67 = arith.addf %64, %66 : vector<8x256xf32>
    %68 = vector.shape_cast %67 : vector<8x256xf32> to vector<1x8x256xf32>
    %c0_42 = arith.constant 0 : index
    %c0_43 = arith.constant 0 : index
    %c0_44 = arith.constant 0 : index
    %69 = vector.load %arg12[%c0_42, %c0_43, %c0_44] : memref<1x8x256xf32, #tpu.memory_space<vmem>>, vector<1x8x256xf32>
    tpu.vector_store %arg12[%c0_42, %c0_43, %c0_44], %68 {strides = array<i32>} : memref<1x8x256xf32, #tpu.memory_space<vmem>>, vector<1x8x256xf32>,
    return
  }
  func.func @transform_0(%arg0: i32, %arg1: i32) -> (i32, i32, i32) {
    %c0_i32 = arith.constant 0 : i32
    %c0_i32_0 = arith.constant 0 : i32
    return %arg1, %arg0, %c0_i32 : i32, i32, i32
  }
  func.func @transform_1(%arg0: i32, %arg1: i32) -> (i32, i32) {
    %c0_i32 = arith.constant 0 : i32
    %c0_i32_0 = arith.constant 0 : i32
    return %arg0, %c0_i32 : i32, i32
  }
  func.func @transform_2(%arg0: i32, %arg1: i32) -> (i32, i32) {
    %c0_i32 = arith.constant 0 : i32
    %c0_i32_0 = arith.constant 0 : i32
    %c0_i32_1 = arith.constant 0 : i32
    return %c0_i32, %c0_i32_0 : i32, i32
  }
  func.func @transform_3(%arg0: i32, %arg1: i32) -> (i32, i32) {
    %c0_i32 = arith.constant 0 : i32
    %c0_i32_0 = arith.constant 0 : i32
    %c0_i32_1 = arith.constant 0 : i32
    return %c0_i32, %c0_i32_0 : i32, i32
  }
  func.func @transform_4(%arg0: i32, %arg1: i32) -> (i32, i32) {
    %c0_i32 = arith.constant 0 : i32
    %c0_i32_0 = arith.constant 0 : i32
    %c0_i32_1 = arith.constant 0 : i32
    return %c0_i32, %c0_i32_0 : i32, i32
  }
  func.func @transform_5(%arg0: i32, %arg1: i32) -> (i32, i32) {
    %c0_i32 = arith.constant 0 : i32
    %c0_i32_0 = arith.constant 0 : i32
    %c0_i32_1 = arith.constant 0 : i32
    return %c0_i32, %c0_i32_0 : i32, i32
  }
  func.func @transform_6(%arg0: i32, %arg1: i32) -> (i32, i32) {
    %c0_i32 = arith.constant 0 : i32
    %c0_i32_0 = arith.constant 0 : i32
    %c0_i32_1 = arith.constant 0 : i32
    return %c0_i32, %c0_i32_0 : i32, i32
  }
  func.func @transform_7(%arg0: i32, %arg1: i32) -> (i32, i32) {
    %c0_i32 = arith.constant 0 : i32
    %c0_i32_0 = arith.constant 0 : i32
    %c0_i32_1 = arith.constant 0 : i32
    return %c0_i32, %c0_i32_0 : i32, i32
  }
  func.func @transform_8(%arg0: i32, %arg1: i32) -> (i32, i32) {
    %c0_i32 = arith.constant 0 : i32
    %c0_i32_0 = arith.constant 0 : i32
    %c0_i32_1 = arith.constant 0 : i32
    return %c0_i32, %c0_i32_0 : i32, i32
  }
  func.func @transform_9(%arg0: i32, %arg1: i32) -> (i32, i32) {
    %c0_i32 = arith.constant 0 : i32
    %c0_i32_0 = arith.constant 0 : i32
    %c0_i32_1 = arith.constant 0 : i32
    return %c0_i32, %c0_i32_0 : i32, i32
  }
  func.func @transform_10(%arg0: i32, %arg1: i32) -> (i32, i32, i32) {
    %c0_i32 = arith.constant 0 : i32
    %c0_i32_0 = arith.constant 0 : i32
    return %arg1, %arg0, %c0_i32 : i32, i32, i32
  }
  func.func @transform_11(%arg0: i32, %arg1: i32) -> (i32, i32) {
    %c0_i32 = arith.constant 0 : i32
    %c0_i32_0 = arith.constant 0 : i32
    return %arg0, %c0_i32 : i32, i32
  }
}

</mosaic_0001>

<llo_original>
// kernel: tpu_custom_call.1
$region0: #{tpu_custom_call.1}
  #allocation0 [shape = 'u32[]', space=smem, size = 0x4, offset = 0x4, fixed_abs, tag = 'smem constant byte address 0x4 - core index']
  #allocation1 [shape = 'u32[144,128]{1,0:T(1,128)}', space=vmem, size = 0x12000, scoped, tag = 'internal scratch']
  #allocation2 [shape = 'f32[1,8,384]{2,1,0:T(8,128)}', space=vmem, size = 0x3000, scoped, tag = 'scratch operand']
  #allocation3 [shape = 'f32[1,8,128]{2,1,0:T(8,128)}', space=vmem, size = 0x1000, scoped, tag = 'scratch operand']
  %s0 = inlined_call_operand.hbm [shape: f32[1,16,64], index: 0, kind: input, shape index: {}]
  %s1 = inlined_call_operand.hbm [shape: f32[16,128], index: 1, kind: input, shape index: {}]
  %s2 = inlined_call_operand.hbm [shape: bf16[64,128], index: 2, kind: input, shape index: {}]
  %s3 = inlined_call_operand.vmem [shape: f32[1,128], index: 3, kind: input, shape index: {}]
  %s4 = inlined_call_operand.hbm [shape: bf16[128,384], index: 4, kind: input, shape index: {}]
  %s5 = inlined_call_operand.vmem [shape: f32[1,384], index: 5, kind: input, shape index: {}]
  %s6 = inlined_call_operand.hbm [shape: bf16[128,384], index: 6, kind: input, shape index: {}]
  %s7 = inlined_call_operand.vmem [shape: f32[1,384], index: 7, kind: input, shape index: {}]
  %s8 = inlined_call_operand.hbm [shape: bf16[128,256], index: 8, kind: input, shape index: {}]
  %s9 = inlined_call_operand.vmem [shape: f32[1,256], index: 9, kind: input, shape index: {}]
  %s10 = inlined_call_operand.hbm [shape: f32[1,16,256], index: 10, kind: output, shape index: {0}]
  %s11 = inlined_call_operand.hbm [shape: f32[16,128], index: 11, kind: output, shape index: {1}]
  %12 = xla_tuple %s10, %s11
  %s13 = sld [smem:[#allocation0]]
  $region109: #{tpu_custom_call.1} parent=0
    _
  %s15 = ssub.s32 1, %s13
  %s16 = scalar_select 0, %s15, %s13
  $region1: #{tpu_custom_call.1} parent=0
    #allocation4 [shape = 'u8[8192]{0}', space=vmem, size = 0x2000, scoped, tag = 'input window, operand 0']
    #allocation5 [shape = 's32[2]{0}', space=sflag, size = 0x8, scoped, tag = 'scoped memory for tpu_custom_call.1']
    #allocation6 [shape = 's32[2]{0}', space=sflag, size = 0x8, scoped, tag = 'scoped memory for tpu_custom_call.1']
    #allocation7 [shape = 'u8[8192]{0}', space=vmem, size = 0x2000, scoped, tag = 'input window, operand 1']
    #allocation8 [shape = 's32[2]{0}', space=sflag, size = 0x8, scoped, tag = 'scoped memory for tpu_custom_call.1']
    #allocation9 [shape = 'u8[16384]{0}', space=vmem, size = 0x4000, scoped, tag = 'input window, operand 2, single buffered']
    #allocation10 [shape = 'u8[98304]{0}', space=vmem, size = 0x18000, scoped, tag = 'input window, operand 4, single buffered']
    #allocation11 [shape = 's32[1]{0}', space=sflag, size = 0x4, scoped, tag = 'scoped memory for tpu_custom_call.1']
    #allocation12 [shape = 'u8[98304]{0}', space=vmem, size = 0x18000, scoped, tag = 'input window, operand 6, single buffered']
    #allocation13 [shape = 'u8[65536]{0}', space=vmem, size = 0x10000, scoped, tag = 'input window, operand 8, single buffered']
    #allocation14 [shape = 's32[1]{0}', space=sflag, size = 0x4, scoped, tag = 'scoped memory for tpu_custom_call.1']
    #allocation15 [shape = 'u8[16384]{0}', space=vmem, size = 0x4000, scoped, tag = 'output window, operand 0']
    #allocation16 [shape = 'u8[8192]{0}', space=vmem, size = 0x2000, scoped, tag = 'output window, operand 1']
    #allocation17 [shape = 's32[2]{0}', space=sflag, size = 0x8, scoped, tag = 'scoped memory for tpu_custom_call.1']
    %17 = vsyncpa [#allocation5], 0
    %s18 = scalar_lea.sflag [#allocation5], 1
    %19 = vsyncpa %s18, 0
    %20 = vsyncpa [#allocation8], 0
    %s21 = scalar_lea.sflag [#allocation8], 1
    %22 = vsyncpa %s21, 0
    %23 = vsyncpa [#allocation11], 0
    %24 = vsyncpa [#allocation14], 0
    %25 = vsyncpa [#allocation6], 0
    %s26 = scalar_lea.sflag [#allocation6], 1
    %27 = vsyncpa %s26, 0
    %28 = vsyncpa [#allocation17], 0
    %s29 = scalar_lea.sflag [#allocation17], 1
    %30 = vsyncpa %s29, 0
    loop: start=0, step=1, limit=4
    $region2: #{tpu_custom_call.1} parent=1 // loop_pre_header
      _
    $region3: #{tpu_custom_call.1} parent=1 // loop_header
      %s32 = sphi 0, %s36
      %p33 = scmp.ge.s32.totalorder %s32, 4
      %s39 = sphi 0, %s51
      %s40 = sphi 0, %s47
      %s41 = sphi 0, %s39
      %s42 = sphi 0, %s40
      %s43 = sphi 0, %s41
      %s44 = sphi 0, %s42
      %s56 = sphi 0, %s58
      %s59 = sphi 0, %s56
      %s60 = sphi 0, %s59
      %s76 = sphi 0, %s60
      %s82 = sphi 0, %s84
      %s85 = sphi 0, %s82
      %s86 = sphi 0, %s85
      %s102 = sphi 0, %s86
      %s106 = sphi 0, %s106
      %s108 = sphi 0, %s106
      %s109 = sphi 0, %s108
      %s123 = sphi 0, %s109
      %s127 = sphi 0, %s127
      %s129 = sphi 0, %s127
      %s130 = sphi 0, %s129
      %s144 = sphi 0, %s130
      %s148 = sphi 0, %s148
      %s150 = sphi 0, %s148
      %s151 = sphi 0, %s150
      %s165 = sphi 0, %s151
      %s169 = sphi 0, %s169
      %s171 = sphi 0, %s169
      %s172 = sphi 0, %s171
      %s186 = sphi 0, %s172
      %s190 = sphi 0, %s190
      %s192 = sphi 0, %s190
      %s193 = sphi 0, %s192
      %s207 = sphi 0, %s193
      %s211 = sphi 0, %s211
      %s213 = sphi 0, %s211
      %s214 = sphi 0, %s213
      %s228 = sphi 0, %s214
      %s232 = sphi 0, %s232
      %s234 = sphi 0, %s232
      %s235 = sphi 0, %s234
      %s249 = sphi 0, %s235
      %s253 = sphi 0, %s253
      %s255 = sphi 0, %s253
      %s256 = sphi 0, %s255
      %s270 = sphi 0, %s256
      %s278 = sphi 0, %s280
      %s281 = sphi 0, %s278
      %s282 = sphi 0, %s281
      %s298 = sphi 0, %s282
      %s304 = sphi 0, %s306
      %s307 = sphi 0, %s304
      %s308 = sphi 0, %s307
      %s324 = sphi 0, %s308
    $region4: #{tpu_custom_call.1} parent=1 // loop_header_branch
      %35 = sbr.rel (%p33) target = $region8
    $region5: #{tpu_custom_call.1} parent=1 // loop_body
      %s37 = ssub.s32 %s32, 1
      %s38 = ssub.s32 %s32, 2
      %s45 = sadd.s32 1, %s40
      %p46 = scmp.ge.s32.totalorder %s45, 1
      %s47 = scalar_select %p46, 0, %s45
      %s48 = sadd.s32 1, %s39
      %s49 = scalar_select %p46, %s48, %s39
      %p50 = scmp.ge.s32.totalorder %s49, 2
      %s51 = scalar_select %p50, 0, %s49
      %s52 = ssub.s32 %s40, %s47
      %s53 = ssub.s32 %s39, %s51
      %s54 = sor.u32 %s52, %s53
      %p55 = scmp.eq.s32.totalorder %s54, 0
      %s57 = sadd.s32 %s56, 1
      %s58 = scalar_select %p55, %s56, %s57
      %p61 = pneg %p55
      %p62 = scmp.eq.s32.totalorder %s32, 1
      %p63 = por %p61, %p62
      %p64 = scmp.ne.s32.totalorder %s56, %s59
      %p65 = scmp.eq.s32.totalorder %s32, 0
      %p66 = por %p64, %p65
      %p67 = scmp.ne.s32.totalorder %s56, %s59
      %p68 = scmp.eq.s32.totalorder %s37, 1
      %p69 = por %p67, %p68
      %p70 = scmp.ne.s32.totalorder %s59, %s60
      %p71 = scmp.eq.s32.totalorder %s37, 0
      %p72 = por %p70, %p71
      %p73 = scmp.ne.s32.totalorder %s59, %s60
      %p74 = scmp.eq.s32.totalorder %s38, 1
      %p75 = por %p73, %p74
      %p77 = scmp.ne.s32.totalorder %s60, %s76
      %p78 = scmp.eq.s32.totalorder %s38, 0
      %p79 = por %p77, %p78
      %s80 = ssub.s32 %s39, %s51
      %p81 = scmp.eq.s32.totalorder %s80, 0
      %s83 = sadd.s32 %s82, 1
      %s84 = scalar_select %p81, %s82, %s83
      %p87 = pneg %p81
      %p88 = scmp.eq.s32.totalorder %s32, 1
      %p89 = por %p87, %p88
      %p90 = scmp.ne.s32.totalorder %s82, %s85
      %p91 = scmp.eq.s32.totalorder %s32, 0
      %p92 = por %p90, %p91
      %p93 = scmp.ne.s32.totalorder %s82, %s85
      %p94 = scmp.eq.s32.totalorder %s37, 1
      %p95 = por %p93, %p94
      %p96 = scmp.ne.s32.totalorder %s85, %s86
      %p97 = scmp.eq.s32.totalorder %s37, 0
      %p98 = por %p96, %p97
      %p99 = scmp.ne.s32.totalorder %s85, %s86
      %p100 = scmp.eq.s32.totalorder %s38, 1
      %p101 = por %p99, %p100
      %p103 = scmp.ne.s32.totalorder %s86, %s102
      %p104 = scmp.eq.s32.totalorder %s38, 0
      %p105 = por %p103, %p104
      %s107 = sadd.s32 %s106, 1
      %p110 = scmp.eq.s32.totalorder %s32, 1
      %p111 = scmp.ne.s32.totalorder %s106, %s108
      %p112 = scmp.eq.s32.totalorder %s32, 0
      %p113 = por %p111, %p112
      %p114 = scmp.ne.s32.totalorder %s106, %s108
      %p115 = scmp.eq.s32.totalorder %s37, 1
      %p116 = por %p114, %p115
      %p117 = scmp.ne.s32.totalorder %s108, %s109
      %p118 = scmp.eq.s32.totalorder %s37, 0
      %p119 = por %p117, %p118
      %p120 = scmp.ne.s32.totalorder %s108, %s109
      %p121 = scmp.eq.s32.totalorder %s38, 1
      %p122 = por %p120, %p121
      %p124 = scmp.ne.s32.totalorder %s109, %s123
      %p125 = scmp.eq.s32.totalorder %s38, 0
      %p126 = por %p124, %p125
      %s128 = sadd.s32 %s127, 1
      %p131 = scmp.eq.s32.totalorder %s32, 1
      %p132 = scmp.ne.s32.totalorder %s127, %s129
      %p133 = scmp.eq.s32.totalorder %s32, 0
      %p134 = por %p132, %p133
      %p135 = scmp.ne.s32.totalorder %s127, %s129
      %p136 = scmp.eq.s32.totalorder %s37, 1
      %p137 = por %p135, %p136
      %p138 = scmp.ne.s32.totalorder %s129, %s130
      %p139 = scmp.eq.s32.totalorder %s37, 0
      %p140 = por %p138, %p139
      %p141 = scmp.ne.s32.totalorder %s129, %s130
      %p142 = scmp.eq.s32.totalorder %s38, 1
      %p143 = por %p141, %p142
      %p145 = scmp.ne.s32.totalorder %s130, %s144
      %p146 = scmp.eq.s32.totalorder %s38, 0
      %p147 = por %p145, %p146
      %s149 = sadd.s32 %s148, 1
      %p152 = scmp.eq.s32.totalorder %s32, 1
      %p153 = scmp.ne.s32.totalorder %s148, %s150
      %p154 = scmp.eq.s32.totalorder %s32, 0
      %p155 = por %p153, %p154
      %p156 = scmp.ne.s32.totalorder %s148, %s150
      %p157 = scmp.eq.s32.totalorder %s37, 1
      %p158 = por %p156, %p157
      %p159 = scmp.ne.s32.totalorder %s150, %s151
      %p160 = scmp.eq.s32.totalorder %s37, 0
      %p161 = por %p159, %p160
      %p162 = scmp.ne.s32.totalorder %s150, %s151
      %p163 = scmp.eq.s32.totalorder %s38, 1
      %p164 = por %p162, %p163
      %p166 = scmp.ne.s32.totalorder %s151, %s165
      %p167 = scmp.eq.s32.totalorder %s38, 0
      %p168 = por %p166, %p167
      %s170 = sadd.s32 %s169, 1
      %p173 = scmp.eq.s32.totalorder %s32, 1
      %p174 = scmp.ne.s32.totalorder %s169, %s171
      %p175 = scmp.eq.s32.totalorder %s32, 0
      %p176 = por %p174, %p175
      %p177 = scmp.ne.s32.totalorder %s169, %s171
      %p178 = scmp.eq.s32.totalorder %s37, 1
      %p179 = por %p177, %p178
      %p180 = scmp.ne.s32.totalorder %s171, %s172
      %p181 = scmp.eq.s32.totalorder %s37, 0
      %p182 = por %p180, %p181
      %p183 = scmp.ne.s32.totalorder %s171, %s172
      %p184 = scmp.eq.s32.totalorder %s38, 1
      %p185 = por %p183, %p184
      %p187 = scmp.ne.s32.totalorder %s172, %s186
      %p188 = scmp.eq.s32.totalorder %s38, 0
      %p189 = por %p187, %p188
      %s191 = sadd.s32 %s190, 1
      %p194 = scmp.eq.s32.totalorder %s32, 1
      %p195 = scmp.ne.s32.totalorder %s190, %s192
      %p196 = scmp.eq.s32.totalorder %s32, 0
      %p197 = por %p195, %p196
      %p198 = scmp.ne.s32.totalorder %s190, %s192
      %p199 = scmp.eq.s32.totalorder %s37, 1
      %p200 = por %p198, %p199
      %p201 = scmp.ne.s32.totalorder %s192, %s193
      %p202 = scmp.eq.s32.totalorder %s37, 0
      %p203 = por %p201, %p202
      %p204 = scmp.ne.s32.totalorder %s192, %s193
      %p205 = scmp.eq.s32.totalorder %s38, 1
      %p206 = por %p204, %p205
      %p208 = scmp.ne.s32.totalorder %s193, %s207
      %p209 = scmp.eq.s32.totalorder %s38, 0
      %p210 = por %p208, %p209
      %s212 = sadd.s32 %s211, 1
      %p215 = scmp.eq.s32.totalorder %s32, 1
      %p216 = scmp.ne.s32.totalorder %s211, %s213
      %p217 = scmp.eq.s32.totalorder %s32, 0
      %p218 = por %p216, %p217
      %p219 = scmp.ne.s32.totalorder %s211, %s213
      %p220 = scmp.eq.s32.totalorder %s37, 1
      %p221 = por %p219, %p220
      %p222 = scmp.ne.s32.totalorder %s213, %s214
      %p223 = scmp.eq.s32.totalorder %s37, 0
      %p224 = por %p222, %p223
      %p225 = scmp.ne.s32.totalorder %s213, %s214
      %p226 = scmp.eq.s32.totalorder %s38, 1
      %p227 = por %p225, %p226
      %p229 = scmp.ne.s32.totalorder %s214, %s228
      %p230 = scmp.eq.s32.totalorder %s38, 0
      %p231 = por %p229, %p230
      %s233 = sadd.s32 %s232, 1
      %p236 = scmp.eq.s32.totalorder %s32, 1
      %p237 = scmp.ne.s32.totalorder %s232, %s234
      %p238 = scmp.eq.s32.totalorder %s32, 0
      %p239 = por %p237, %p238
      %p240 = scmp.ne.s32.totalorder %s232, %s234
      %p241 = scmp.eq.s32.totalorder %s37, 1
      %p242 = por %p240, %p241
      %p243 = scmp.ne.s32.totalorder %s234, %s235
      %p244 = scmp.eq.s32.totalorder %s37, 0
      %p245 = por %p243, %p244
      %p246 = scmp.ne.s32.totalorder %s234, %s235
      %p247 = scmp.eq.s32.totalorder %s38, 1
      %p248 = por %p246, %p247
      %p250 = scmp.ne.s32.totalorder %s235, %s249
      %p251 = scmp.eq.s32.totalorder %s38, 0
      %p252 = por %p250, %p251
      %s254 = sadd.s32 %s253, 1
      %p257 = scmp.eq.s32.totalorder %s32, 1
      %p258 = scmp.ne.s32.totalorder %s253, %s255
      %p259 = scmp.eq.s32.totalorder %s32, 0
      %p260 = por %p258, %p259
      %p261 = scmp.ne.s32.totalorder %s253, %s255
      %p262 = scmp.eq.s32.totalorder %s37, 1
      %p263 = por %p261, %p262
      %p264 = scmp.ne.s32.totalorder %s255, %s256
      %p265 = scmp.eq.s32.totalorder %s37, 0
      %p266 = por %p264, %p265
      %p267 = scmp.ne.s32.totalorder %s255, %s256
      %p268 = scmp.eq.s32.totalorder %s38, 1
      %p269 = por %p267, %p268
      %p271 = scmp.ne.s32.totalorder %s256, %s270
      %p272 = scmp.eq.s32.totalorder %s38, 0
      %p273 = por %p271, %p272
      %s274 = ssub.s32 %s40, %s47
      %s275 = ssub.s32 %s39, %s51
      %s276 = sor.u32 %s274, %s275
      %p277 = scmp.eq.s32.totalorder %s276, 0
      %s279 = sadd.s32 %s278, 1
      %s280 = scalar_select %p277, %s278, %s279
      %p283 = pneg %p277
      %p284 = scmp.eq.s32.totalorder %s32, 1
      %p285 = por %p283, %p284
      %p286 = scmp.ne.s32.totalorder %s278, %s281
      %p287 = scmp.eq.s32.totalorder %s32, 0
      %p288 = por %p286, %p287
      %p289 = scmp.ne.s32.totalorder %s278, %s281
      %p290 = scmp.eq.s32.totalorder %s37, 1
      %p291 = por %p289, %p290
      %p292 = scmp.ne.s32.totalorder %s281, %s282
      %p293 = scmp.eq.s32.totalorder %s37, 0
      %p294 = por %p292, %p293
      %p295 = scmp.ne.s32.totalorder %s281, %s282
      %p296 = scmp.eq.s32.totalorder %s38, 1
      %p297 = por %p295, %p296
      %p299 = scmp.ne.s32.totalorder %s282, %s298
      %p300 = scmp.eq.s32.totalorder %s38, 0
      %p301 = por %p299, %p300
      %s302 = ssub.s32 %s39, %s51
      %p303 = scmp.eq.s32.totalorder %s302, 0
      %s305 = sadd.s32 %s304, 1
      %s306 = scalar_select %p303, %s304, %s305
      %p309 = pneg %p303
      %p310 = scmp.eq.s32.totalorder %s32, 1
      %p311 = por %p309, %p310
      %p312 = scmp.ne.s32.totalorder %s304, %s307
      %p313 = scmp.eq.s32.totalorder %s32, 0
      %p314 = por %p312, %p313
      %p315 = scmp.ne.s32.totalorder %s304, %s307
      %p316 = scmp.eq.s32.totalorder %s37, 1
      %p317 = por %p315, %p316
      %p318 = scmp.ne.s32.totalorder %s307, %s308
      %p319 = scmp.eq.s32.totalorder %s37, 0
      %p320 = por %p318, %p319
      %p321 = scmp.ne.s32.totalorder %s307, %s308
      %p322 = scmp.eq.s32.totalorder %s38, 1
      %p323 = por %p321, %p322
      %p325 = scmp.ne.s32.totalorder %s308, %s324
      %p326 = scmp.eq.s32.totalorder %s38, 0
      %p327 = por %p325, %p326
      %p328 = scmp.le.s32.totalorder 1, %s32
      %p329 = scmp.lt.s32.totalorder %s32, 3
      %p330 = pnand %p328, %p329
      %p331 = pneg %p330
      // Predicated region
      $region9: #{tpu_custom_call.1} parent=5 // pred_check
        _
      $region10: #{tpu_custom_call.1} parent=5 // pred_check_branch
        %333 = sbr.rel (%p330) target = $region12
      $region11: #{tpu_custom_call.1} parent=5 // pred_region
        %s334 = ssub.s32 %s32, 1
        // Predicated region
        $region13: #{tpu_custom_call.1} parent=11 // pred_check
          %p335 = pneg %p119
        $region14: #{tpu_custom_call.1} parent=11 // pred_check_branch
          %337 = sbr.rel (%p335) target = $region16
        $region15: #{tpu_custom_call.1} parent=11 // pred_region
          %s339 = ssub.s32 512, 512
          %340 = vsyncadd [#allocation8], %s339
          %s341 = sshll.u32 [#allocation9], 4
          %s342 = int_to_ptr.vmem [resolvable:$true] %s341
          %347 = dma.hbm_to_vmem [thread:$0]  %s2, 512, %s342, [#allocation8], 64, 64, 4
        $region16: #{tpu_custom_call.1} parent=11 // pred_fallthru
          _
        // Predicated region
        $region17: #{tpu_custom_call.1} parent=11 // pred_check
          %p348 = pneg %p140
        $region18: #{tpu_custom_call.1} parent=11 // pred_check_branch
          %350 = sbr.rel (%p348) target = $region20
        $region19: #{tpu_custom_call.1} parent=11 // pred_region
          _
        $region20: #{tpu_custom_call.1} parent=11 // pred_fallthru
          _
        // Predicated region
        $region21: #{tpu_custom_call.1} parent=11 // pred_check
          %p351 = pneg %p161
        $region22: #{tpu_custom_call.1} parent=11 // pred_check_branch
          %353 = sbr.rel (%p351) target = $region24
        $region23: #{tpu_custom_call.1} parent=11 // pred_region
          %s355 = ssub.s32 3072, 3072
          %356 = vsyncadd [#allocation11], %s355
          %s357 = sshll.u32 [#allocation10], 4
          %s358 = int_to_ptr.vmem [resolvable:$true] %s357
          %363 = dma.hbm_to_vmem [thread:$0]  %s4, 3072, %s358, [#allocation11], 192, 192, 12
        $region24: #{tpu_custom_call.1} parent=11 // pred_fallthru
          _
        // Predicated region
        $region25: #{tpu_custom_call.1} parent=11 // pred_check
          %p364 = pneg %p182
        $region26: #{tpu_custom_call.1} parent=11 // pred_check_branch
          %366 = sbr.rel (%p364) target = $region28
        $region27: #{tpu_custom_call.1} parent=11 // pred_region
          _
        $region28: #{tpu_custom_call.1} parent=11 // pred_fallthru
          _
        // Predicated region
        $region29: #{tpu_custom_call.1} parent=11 // pred_check
          %p367 = pneg %p203
        $region30: #{tpu_custom_call.1} parent=11 // pred_check_branch
          %369 = sbr.rel (%p367) target = $region32
        $region31: #{tpu_custom_call.1} parent=11 // pred_region
          %s371 = ssub.s32 3072, 3072
          %372 = vsyncadd [#allocation11], %s371
          %s373 = sshll.u32 [#allocation12], 4
          %s374 = int_to_ptr.vmem [resolvable:$true] %s373
          %379 = dma.hbm_to_vmem [thread:$0]  %s6, 3072, %s374, [#allocation11], 192, 192, 12
        $region32: #{tpu_custom_call.1} parent=11 // pred_fallthru
          _
        // Predicated region
        $region33: #{tpu_custom_call.1} parent=11 // pred_check
          %p380 = pneg %p224
        $region34: #{tpu_custom_call.1} parent=11 // pred_check_branch
          %382 = sbr.rel (%p380) target = $region36
        $region35: #{tpu_custom_call.1} parent=11 // pred_region
          _
        $region36: #{tpu_custom_call.1} parent=11 // pred_fallthru
          _
        // Predicated region
        $region37: #{tpu_custom_call.1} parent=11 // pred_check
          %p383 = pneg %p245
        $region38: #{tpu_custom_call.1} parent=11 // pred_check_branch
          %385 = sbr.rel (%p383) target = $region40
        $region39: #{tpu_custom_call.1} parent=11 // pred_region
          %s387 = ssub.s32 2048, 2048
          %388 = vsyncadd [#allocation14], %s387
          %s389 = sshll.u32 [#allocation13], 4
          %s390 = int_to_ptr.vmem [resolvable:$true] %s389
          %395 = dma.hbm_to_vmem [thread:$0]  %s8, 2048, %s390, [#allocation14], 128, 128, 8
        $region40: #{tpu_custom_call.1} parent=11 // pred_fallthru
          _
        // Predicated region
        $region41: #{tpu_custom_call.1} parent=11 // pred_check
          %p396 = pneg %p266
        $region42: #{tpu_custom_call.1} parent=11 // pred_check_branch
          %398 = sbr.rel (%p396) target = $region44
        $region43: #{tpu_custom_call.1} parent=11 // pred_region
          _
        $region44: #{tpu_custom_call.1} parent=11 // pred_fallthru
          _
      $region12: #{tpu_custom_call.1} parent=5 // pred_fallthru
        _
      %p399 = scmp.lt.s32.totalorder %s32, 2
      // Predicated region
      $region45: #{tpu_custom_call.1} parent=5 // pred_check
        %p400 = pneg %p399
      $region46: #{tpu_custom_call.1} parent=5 // pred_check_branch
        %402 = sbr.rel (%p400) target = $region48
      $region47: #{tpu_custom_call.1} parent=5 // pred_region
        // Predicated region
        $region49: #{tpu_custom_call.1} parent=47 // pred_check
          %p403 = pneg %p66
        $region50: #{tpu_custom_call.1} parent=47 // pred_check_branch
          %405 = sbr.rel (%p403) target = $region52
        $region51: #{tpu_custom_call.1} parent=47 // pred_region
          %s406 = sand.u32 %s56, 1
          %s407 = scalar_lea.sflag [#allocation5], %s406
          %s408 = sand.u32 %s56, 1
          %s409 = smul.addr %s408, 8
          %s410 = scalar_lea.vmem [#allocation4], %s409
          %s412 = ssub.s32 128, 128
          %413 = vsyncadd %s407, %s412
          %s414 = smul.addr %s40, 2
          %s415 = sadd.s32 %s39, %s414
          %s416 = smul.addr %s415, 128
          %s417 = scalar_lea.hbm %s0, %s416
          %s419 = sshll.u32 %s410, 4
          %s420 = int_to_ptr.vmem [resolvable:$true] %s419
          %422 = dma.hbm_to_vmem [thread:$0]  %s417, 128, %s420, %s407
        $region52: #{tpu_custom_call.1} parent=47 // pred_fallthru
          _
        // Predicated region
        $region53: #{tpu_custom_call.1} parent=47 // pred_check
          %p423 = pneg %p92
        $region54: #{tpu_custom_call.1} parent=47 // pred_check_branch
          %425 = sbr.rel (%p423) target = $region56
        $region55: #{tpu_custom_call.1} parent=47 // pred_region
          %s426 = sand.u32 %s32, 1
          %s427 = scalar_lea.sflag [#allocation8], %s426
          %s428 = sand.u32 %s82, 1
          %s429 = smul.addr %s428, 8
          %s430 = scalar_lea.vmem [#allocation7], %s429
          %s432 = ssub.s32 128, 128
          %433 = vsyncadd %s427, %s432
          %s434 = smul.addr %s39, 128
          %s435 = scalar_lea.hbm %s1, %s434
          %s437 = sshll.u32 %s430, 4
          %s438 = int_to_ptr.vmem [resolvable:$true] %s437
          %440 = dma.hbm_to_vmem [thread:$0]  %s435, 128, %s438, %s427
        $region56: #{tpu_custom_call.1} parent=47 // pred_fallthru
          _
      $region48: #{tpu_custom_call.1} parent=5 // pred_fallthru
        _
      %p441 = scmp.le.s32.totalorder 1, %s32
      %p442 = scmp.lt.s32.totalorder %s32, 3
      %p443 = pnand %p441, %p442
      %p444 = pneg %p443
      // Predicated region
      $region57: #{tpu_custom_call.1} parent=5 // pred_check
        _
      $region58: #{tpu_custom_call.1} parent=5 // pred_check_branch
        %446 = sbr.rel (%p443) target = $region60
      $region59: #{tpu_custom_call.1} parent=5 // pred_region
        %s447 = ssub.s32 %s32, 1
        %s448 = sand.u32 %s59, 1
        %s449 = scalar_lea.sflag [#allocation5], %s448
        %s450 = sand.u32 %s59, 1
        %s451 = smul.addr %s450, 8
        %s452 = scalar_lea.vmem [#allocation4], %s451
        // Predicated region
        $region61: #{tpu_custom_call.1} parent=59 // pred_check
          %p453 = pneg %p72
        $region62: #{tpu_custom_call.1} parent=59 // pred_check_branch
          %455 = sbr.rel (%p453) target = $region64
        $region63: #{tpu_custom_call.1} parent=59 // pred_region
          %456 = dma.done %s449, 128
        $region64: #{tpu_custom_call.1} parent=59 // pred_fallthru
          _
        %s457 = sand.u32 %s37, 1
        %s458 = scalar_lea.sflag [#allocation8], %s457
        %s459 = sand.u32 %s85, 1
        %s460 = smul.addr %s459, 8
        %s461 = scalar_lea.vmem [#allocation7], %s460
        // Predicated region
        $region65: #{tpu_custom_call.1} parent=59 // pred_check
          %p462 = pneg %p98
        $region66: #{tpu_custom_call.1} parent=59 // pred_check_branch
          %464 = sbr.rel (%p462) target = $region68
        $region67: #{tpu_custom_call.1} parent=59 // pred_region
          %465 = dma.done %s458, 128
        $region68: #{tpu_custom_call.1} parent=59 // pred_fallthru
          _
        // Predicated region
        $region69: #{tpu_custom_call.1} parent=59 // pred_check
          %p466 = pneg %p119
        $region70: #{tpu_custom_call.1} parent=59 // pred_check_branch
          %468 = sbr.rel (%p466) target = $region72
        $region71: #{tpu_custom_call.1} parent=59 // pred_region
          %469 = dma.done [#allocation8], 512
        $region72: #{tpu_custom_call.1} parent=59 // pred_fallthru
          _
        // Predicated region
        $region73: #{tpu_custom_call.1} parent=59 // pred_check
          %p470 = pneg %p161
        $region74: #{tpu_custom_call.1} parent=59 // pred_check_branch
          %472 = sbr.rel (%p470) target = $region76
        $region75: #{tpu_custom_call.1} parent=59 // pred_region
          %473 = dma.done [#allocation11], 3072
        $region76: #{tpu_custom_call.1} parent=59 // pred_fallthru
          _
        // Predicated region
        $region77: #{tpu_custom_call.1} parent=59 // pred_check
          %p474 = pneg %p203
        $region78: #{tpu_custom_call.1} parent=59 // pred_check_branch
          %476 = sbr.rel (%p474) target = $region80
        $region79: #{tpu_custom_call.1} parent=59 // pred_region
          %477 = dma.done [#allocation11], 3072
        $region80: #{tpu_custom_call.1} parent=59 // pred_fallthru
          _
        // Predicated region
        $region81: #{tpu_custom_call.1} parent=59 // pred_check
          %p478 = pneg %p245
        $region82: #{tpu_custom_call.1} parent=59 // pred_check_branch
          %480 = sbr.rel (%p478) target = $region84
        $region83: #{tpu_custom_call.1} parent=59 // pred_region
          %481 = dma.done [#allocation14], 2048
        $region84: #{tpu_custom_call.1} parent=59 // pred_fallthru
          _
        %s482 = sand.u32 %s59, 1
        %s483 = scalar_lea.sflag [#allocation5], %s482
        %s484 = sand.u32 %s59, 1
        %s485 = smul.addr %s484, 8
        %s486 = scalar_lea.vmem [#allocation4], %s485
        %p487 = pneg %p72
        %p488 = pneg %p69
        %s489 = sand.u32 %s37, 1
        %s490 = scalar_lea.sflag [#allocation8], %s489
        %s491 = sand.u32 %s85, 1
        %s492 = smul.addr %s491, 8
        %s493 = scalar_lea.vmem [#allocation7], %s492
        %p494 = pneg %p98
        %p495 = pneg %p95
        %p496 = pneg %p119
        %p497 = pneg %p116
        %p498 = pneg %p140
        %p499 = pneg %p137
        %p500 = pneg %p161
        %p501 = pneg %p158
        %p502 = pneg %p182
        %p503 = pneg %p179
        %p504 = pneg %p203
        %p505 = pneg %p200
        %p506 = pneg %p224
        %p507 = pneg %p221
        %p508 = pneg %p245
        %p509 = pneg %p242
        %p510 = pneg %p266
        %p511 = pneg %p263
        %p512 = pneg %p294
        %p513 = pneg %p291
        %s514 = sand.u32 %s281, 1
        %s515 = scalar_lea.sflag [#allocation6], %s514
        %s516 = sand.u32 %s281, 1
        %s517 = smul.addr %s516, 16
        %s518 = scalar_lea.vmem [#allocation15], %s517
        %p519 = pneg %p320
        %p520 = pneg %p317
        %s521 = sand.u32 %s307, 1
        %s522 = scalar_lea.sflag [#allocation17], %s521
        %s523 = sand.u32 %s307, 1
        %s524 = smul.addr %s523, 8
        %s525 = scalar_lea.vmem [#allocation16], %s524
        %p527 = scmp.eq.s32.totalorder %s42, 0
        // Predicated region
        $region85: #{tpu_custom_call.1} parent=59 // pred_check
          %p528 = pneg %p527
        $region86: #{tpu_custom_call.1} parent=59 // pred_check_branch
          %530 = sbr.rel (%p528) target = $region88
        $region87: #{tpu_custom_call.1} parent=59 // pred_region
          %v531 = vld [vmem:[%s461] sm:$0xff]
          %532 = vst [vmem:[%s525] sm:$0xff] %v531
        $region88: #{tpu_custom_call.1} parent=59 // pred_fallthru
          _
        %v533 = vld [vmem:[%s452] sm:$0xff]
        %v534 = vpack.c.bf16 %v533, %v533
        %v535 = vld [vmem:[#allocation9] sm:$0xf]
        %v536 = vld [vmem:[#allocation9 + $0x4] sm:$0xf]
        %v537 = vld [vmem:[#allocation9 + $0x8] sm:$0xf]
        %v538 = vld [vmem:[#allocation9 + $0xc] sm:$0xf]
        %v539 = vld [vmem:[#allocation9 + $0x10] sm:$0xf]
        %v540 = vld [vmem:[#allocation9 + $0x14] sm:$0xf]
        %v541 = vld [vmem:[#allocation9 + $0x18] sm:$0xf]
        %v542 = vld [vmem:[#allocation9 + $0x1c] sm:$0xf]
        %v543 = vld [vmem:[%s3] sm:$0x1]
        %v545 = vlaneseq
        %v546 = vshrl.u32 %v545, 7
        %v547 = vsub.s32 0, %v546
        %v548 = vrot.slane %v543, %v547
        %v558 = vunpack.c.l.b16 %v535
        %v559 = vunpack.c.l.b16 %v536
        %v560 = vunpack.c.l.b16 %v537
        %v561 = vunpack.c.l.b16 %v538
        %v562 = vunpack.c.l.b16 %v539
        %v563 = vunpack.c.l.b16 %v540
        %v564 = vunpack.c.l.b16 %v541
        %v565 = vunpack.c.l.b16 %v542
        %v566 = vpack.c.b16 %v559, %v558
        %v567 = vpack.c.b16 %v561, %v560
        %v568 = vpack.c.b16 %v563, %v562
        %v569 = vpack.c.b16 %v565, %v564
        %vm574 = vcmask 523264
        %v576 = vsel %vm574, %v534, 0
        %578 = vmatprep.subr.bf16.mxu0 0
        %579 = vmatpush1.bf16.msra.mxu0 %v566
        %580 = vmatprep.subr.bf16.mxu0 0
        %581 = vmatpush1.bf16.msra.mxu0 %v567
        %582 = vmatprep.subr.bf16.mxu0 0
        %583 = vmatpush1.bf16.msra.mxu0 %v568
        %584 = vmatprep.subr.bf16.mxu0 0
        %585 = vmatpush1.bf16.msra.mxu0 %v569
        %586 = vmatprep.subr.bf16.mxu0 0
        %587 = vmatpush1.bf16.msra.mxu0 0
        %588 = vmatprep.subr.bf16.mxu0 0
        %589 = vmatpush1.bf16.msra.mxu0 0
        %590 = vmatprep.subr.bf16.mxu0 0
        %591 = vmatpush1.bf16.msra.mxu0 0
        %592 = vmatprep.subr.bf16.mxu0 0
        %593 = vmatpush1.bf16.msra.mxu0 0
        %594 = vmatprep.subr.bf16.mxu0 0
        %595 = vmatpush1.bf16.msra.mxu0 0
        %596 = vmatprep.subr.bf16.mxu0 0
        %597 = vmatpush1.bf16.msra.mxu0 0
        %598 = vmatprep.subr.bf16.mxu0 0
        %599 = vmatpush1.bf16.msra.mxu0 0
        %600 = vmatprep.subr.bf16.mxu0 0
        %601 = vmatpush1.bf16.msra.mxu0 0
        %602 = vmatprep.subr.bf16.mxu0 0
        %603 = vmatpush1.bf16.msra.mxu0 0
        %604 = vmatprep.subr.bf16.mxu0 0
        %605 = vmatpush1.bf16.msra.mxu0 0
        %606 = vmatprep.subr.bf16.mxu0 0
        %607 = vmatpush1.bf16.msra.mxu0 0
        %608 = vmatprep.subr.bf16.mxu0 0
        %609 = vmatpush1.bf16.msra.mxu0 0
        %610 = vmatprep.mubr.bf16.mxu0 0
        %611 = vmatmul.mubr.bf16.gmra.mrb[0].mxu0 %v576
        %v612 = vpop.f32.mrb[0].mxu0
        %v613 = vadd.f32 %v548, %v612
        %v614 = vpop.f32.mrb[0].mxu0
        %v615 = vpop.f32.mrb[0].mxu0
        %v616 = vpop.f32.mrb[0].mxu0
        %617 = vdwg.mxu0
        %v618 = vmax.f32 %v613, 0.0
        %v619 = vpack.c.bf16 %v618, %v618
        %v620 = vld [vmem:[#allocation10] sm:$0xff]
        %v621 = vld [vmem:[#allocation10 + $0x8] sm:$0xf]
        %v622 = vld [vmem:[#allocation10 + $0xc] sm:$0xff]
        %v623 = vld [vmem:[#allocation10 + $0x14] sm:$0xf]
        %v624 = vld [vmem:[#allocation10 + $0x18] sm:$0xff]
        %v625 = vld [vmem:[#allocation10 + $0x20] sm:$0xf]
        %v626 = vld [vmem:[#allocation10 + $0x24] sm:$0xff]
        %v627 = vld [vmem:[#allocation10 + $0x2c] sm:$0xf]
        %v628 = vld [vmem:[#allocation10 + $0x30] sm:$0xff]
        %v629 = vld [vmem:[#allocation10 + $0x38] sm:$0xf]
        %v630 = vld [vmem:[#allocation10 + $0x3c] sm:$0xff]
        %v631 = vld [vmem:[#allocation10 + $0x44] sm:$0xf]
        %v632 = vld [vmem:[#allocation10 + $0x48] sm:$0xff]
        %v633 = vld [vmem:[#allocation10 + $0x50] sm:$0xf]
        %v634 = vld [vmem:[#allocation10 + $0x54] sm:$0xff]
        %v635 = vld [vmem:[#allocation10 + $0x5c] sm:$0xf]
        %v636 = vld [vmem:[#allocation10 + $0x60] sm:$0xff]
        %v637 = vld [vmem:[#allocation10 + $0x68] sm:$0xf]
        %v638 = vld [vmem:[#allocation10 + $0x6c] sm:$0xff]
        %v639 = vld [vmem:[#allocation10 + $0x74] sm:$0xf]
        %v640 = vld [vmem:[#allocation10 + $0x78] sm:$0xff]
        %v641 = vld [vmem:[#allocation10 + $0x80] sm:$0xf]
        %v642 = vld [vmem:[#allocation10 + $0x84] sm:$0xff]
        %v643 = vld [vmem:[#allocation10 + $0x8c] sm:$0xf]
        %v644 = vld [vmem:[#allocation10 + $0x90] sm:$0xff]
        %v645 = vld [vmem:[#allocation10 + $0x98] sm:$0xf]
        %v646 = vld [vmem:[#allocation10 + $0x9c] sm:$0xff]
        %v647 = vld [vmem:[#allocation10 + $0xa4] sm:$0xf]
        %v648 = vld [vmem:[#allocation10 + $0xa8] sm:$0xff]
        %v649 = vld [vmem:[#allocation10 + $0xb0] sm:$0xf]
        %v650 = vld [vmem:[#allocation10 + $0xb4] sm:$0xff]
        %v651 = vld [vmem:[#allocation10 + $0xbc] sm:$0xf]
        %v652 = vld [vmem:[%s5] sm:$0x7]
        %v654 = vlaneseq
        %v655 = vshrl.u32 %v654, 7
        %v656 = vsub.s32 0, %v655
        %v657 = vrot.slane %v652, %v656
        %v658 = vlaneseq
        %v659 = vshrl.u32 %v658, 7
        %v660 = vsub.s32 1, %v659
        %v661 = vrot.slane %v652, %v660
        %v662 = vlaneseq
        %v663 = vshrl.u32 %v662, 7
        %v664 = vsub.s32 2, %v663
        %v665 = vrot.slane %v652, %v664
        %v701 = vunpack.c.l.b16 %v620
        %v702 = vunpack.c.h.b16 %v620
        %v703 = vunpack.c.l.b16 %v621
        %v704 = vunpack.c.l.b16 %v622
        %v705 = vunpack.c.h.b16 %v622
        %v706 = vunpack.c.l.b16 %v623
        %v707 = vunpack.c.l.b16 %v624
        %v708 = vunpack.c.h.b16 %v624
        %v709 = vunpack.c.l.b16 %v625
        %v710 = vunpack.c.l.b16 %v626
        %v711 = vunpack.c.h.b16 %v626
        %v712 = vunpack.c.l.b16 %v627
        %v713 = vunpack.c.l.b16 %v628
        %v714 = vunpack.c.h.b16 %v628
        %v715 = vunpack.c.l.b16 %v629
        %v716 = vunpack.c.l.b16 %v630
        %v717 = vunpack.c.h.b16 %v630
        %v718 = vunpack.c.l.b16 %v631
        %v719 = vunpack.c.l.b16 %v632
        %v720 = vunpack.c.h.b16 %v632
        %v721 = vunpack.c.l.b16 %v633
        %v722 = vunpack.c.l.b16 %v634
        %v723 = vunpack.c.h.b16 %v634
        %v724 = vunpack.c.l.b16 %v635
        %v725 = vunpack.c.l.b16 %v636
        %v726 = vunpack.c.h.b16 %v636
        %v727 = vunpack.c.l.b16 %v637
        %v728 = vunpack.c.l.b16 %v638
        %v729 = vunpack.c.h.b16 %v638
        %v730 = vunpack.c.l.b16 %v639
        %v731 = vunpack.c.l.b16 %v640
        %v732 = vunpack.c.h.b16 %v640
        %v733 = vunpack.c.l.b16 %v641
        %v734 = vunpack.c.l.b16 %v642
        %v735 = vunpack.c.h.b16 %v642
        %v736 = vunpack.c.l.b16 %v643
        %v737 = vunpack.c.l.b16 %v644
        %v738 = vunpack.c.h.b16 %v644
        %v739 = vunpack.c.l.b16 %v645
        %v740 = vunpack.c.l.b16 %v646
        %v741 = vunpack.c.h.b16 %v646
        %v742 = vunpack.c.l.b16 %v647
        %v743 = vunpack.c.l.b16 %v648
        %v744 = vunpack.c.h.b16 %v648
        %v745 = vunpack.c.l.b16 %v649
        %v746 = vunpack.c.l.b16 %v650
        %v747 = vunpack.c.h.b16 %v650
        %v748 = vunpack.c.l.b16 %v651
        %v749 = vpack.c.b16 %v704, %v701
        %v750 = vpack.c.b16 %v705, %v702
        %v751 = vpack.c.b16 %v706, %v703
        %v752 = vpack.c.b16 %v710, %v707
        %v753 = vpack.c.b16 %v711, %v708
        %v754 = vpack.c.b16 %v712, %v709
        %v755 = vpack.c.b16 %v716, %v713
        %v756 = vpack.c.b16 %v717, %v714
        %v757 = vpack.c.b16 %v718, %v715
        %v758 = vpack.c.b16 %v722, %v719
        %v759 = vpack.c.b16 %v723, %v720
        %v760 = vpack.c.b16 %v724, %v721
        %v761 = vpack.c.b16 %v728, %v725
        %v762 = vpack.c.b16 %v729, %v726
        %v763 = vpack.c.b16 %v730, %v727
        %v764 = vpack.c.b16 %v734, %v731
        %v765 = vpack.c.b16 %v735, %v732
        %v766 = vpack.c.b16 %v736, %v733
        %v767 = vpack.c.b16 %v740, %v737
        %v768 = vpack.c.b16 %v741, %v738
        %v769 = vpack.c.b16 %v742, %v739
        %v770 = vpack.c.b16 %v746, %v743
        %v771 = vpack.c.b16 %v747, %v744
        %v772 = vpack.c.b16 %v748, %v745
        %797 = vmatprep.subr.bf16.mxu0 %v750
        %798 = vmatpush1.bf16.msra.mxu0 %v749
        %799 = vmatprep.subr.bf16.mxu0 %v753
        %800 = vmatpush1.bf16.msra.mxu0 %v752
        %801 = vmatprep.subr.bf16.mxu0 %v756
        %802 = vmatpush1.bf16.msra.mxu0 %v755
        %803 = vmatprep.subr.bf16.mxu0 %v759
        %804 = vmatpush1.bf16.msra.mxu0 %v758
        %805 = vmatprep.subr.bf16.mxu0 %v762
        %806 = vmatpush1.bf16.msra.mxu0 %v761
        %807 = vmatprep.subr.bf16.mxu0 %v765
        %808 = vmatpush1.bf16.msra.mxu0 %v764
        %809 = vmatprep.subr.bf16.mxu0 %v768
        %810 = vmatpush1.bf16.msra.mxu0 %v767
        %811 = vmatprep.subr.bf16.mxu0 %v771
        %812 = vmatpush1.bf16.msra.mxu0 %v770
        %813 = vmatprep.subr.bf16.mxu0 0
        %814 = vmatpush1.bf16.msra.mxu0 0
        %815 = vmatprep.subr.bf16.mxu0 0
        %816 = vmatpush1.bf16.msra.mxu0 0
        %817 = vmatprep.subr.bf16.mxu0 0
        %818 = vmatpush1.bf16.msra.mxu0 0
        %819 = vmatprep.subr.bf16.mxu0 0
        %820 = vmatpush1.bf16.msra.mxu0 0
        %821 = vmatprep.subr.bf16.mxu0 0
        %822 = vmatpush1.bf16.msra.mxu0 0
        %823 = vmatprep.subr.bf16.mxu0 0
        %824 = vmatpush1.bf16.msra.mxu0 0
        %825 = vmatprep.subr.bf16.mxu0 0
        %826 = vmatpush1.bf16.msra.mxu0 0
        %827 = vmatprep.subr.bf16.mxu0 0
        %828 = vmatpush1.bf16.msra.mxu0 0
        %829 = vmatprep.mubr.bf16.mxu0 0
        %830 = vmatmul.mubr.bf16.gmra.mrb[0].mxu0 %v619
        %v831 = vpop.f32.mrb[0].mxu0
        %v832 = vadd.f32 %v657, %v831
        %v833 = vpop.f32.mrb[0].mxu0
        %v834 = vadd.f32 %v661, %v833
        %v835 = vpop.f32.mrb[0].mxu0
        %v836 = vpop.f32.mrb[0].mxu0
        %837 = vdwg.mxu0
        %838 = vmatprep.subr.bf16.mxu0 0
        %839 = vmatpush1.bf16.msra.mxu0 %v751
        %840 = vmatprep.subr.bf16.mxu0 0
        %841 = vmatpush1.bf16.msra.mxu0 %v754
        %842 = vmatprep.subr.bf16.mxu0 0
        %843 = vmatpush1.bf16.msra.mxu0 %v757
        %844 = vmatprep.subr.bf16.mxu0 0
        %845 = vmatpush1.bf16.msra.mxu0 %v760
        %846 = vmatprep.subr.bf16.mxu0 0
        %847 = vmatpush1.bf16.msra.mxu0 %v763
        %848 = vmatprep.subr.bf16.mxu0 0
        %849 = vmatpush1.bf16.msra.mxu0 %v766
        %850 = vmatprep.subr.bf16.mxu0 0
        %851 = vmatpush1.bf16.msra.mxu0 %v769
        %852 = vmatprep.subr.bf16.mxu0 0
        %853 = vmatpush1.bf16.msra.mxu0 %v772
        %854 = vmatprep.subr.bf16.mxu0 0
        %855 = vmatpush1.bf16.msra.mxu0 0
        %856 = vmatprep.subr.bf16.mxu0 0
        %857 = vmatpush1.bf16.msra.mxu0 0
        %858 = vmatprep.subr.bf16.mxu0 0
        %859 = vmatpush1.bf16.msra.mxu0 0
        %860 = vmatprep.subr.bf16.mxu0 0
        %861 = vmatpush1.bf16.msra.mxu0 0
        %862 = vmatprep.subr.bf16.mxu0 0
        %863 = vmatpush1.bf16.msra.mxu0 0
        %864 = vmatprep.subr.bf16.mxu0 0
        %865 = vmatpush1.bf16.msra.mxu0 0
        %866 = vmatprep.subr.bf16.mxu0 0
        %867 = vmatpush1.bf16.msra.mxu0 0
        %868 = vmatprep.subr.bf16.mxu0 0
        %869 = vmatpush1.bf16.msra.mxu0 0
        %870 = vmatprep.mubr.bf16.mxu0 0
        %871 = vmatmul.mubr.bf16.gmra.mrb[0].mxu0 %v619
        %v872 = vpop.f32.mrb[0].mxu0
        %v873 = vadd.f32 %v665, %v872
        %v874 = vpop.f32.mrb[0].mxu0
        %v875 = vpop.f32.mrb[0].mxu0
        %v876 = vpop.f32.mrb[0].mxu0
        %877 = vdwg.mxu0
        %878 = vst [vmem:[#allocation2] sm:$0xff] %v832
        %879 = vst [vmem:[#allocation2 + $0x8] sm:$0xff] %v834
        %880 = vst [vmem:[#allocation2 + $0x10] sm:$0xff] %v873
        %v881 = vld [vmem:[#allocation12] sm:$0xff]
        %v882 = vld [vmem:[#allocation12 + $0x8] sm:$0xf]
        %v883 = vld [vmem:[#allocation12 + $0xc] sm:$0xff]
        %v884 = vld [vmem:[#allocation12 + $0x14] sm:$0xf]
        %v885 = vld [vmem:[#allocation12 + $0x18] sm:$0xff]
        %v886 = vld [vmem:[#allocation12 + $0x20] sm:$0xf]
        %v887 = vld [vmem:[#allocation12 + $0x24] sm:$0xff]
        %v888 = vld [vmem:[#allocation12 + $0x2c] sm:$0xf]
        %v889 = vld [vmem:[#allocation12 + $0x30] sm:$0xff]
        %v890 = vld [vmem:[#allocation12 + $0x38] sm:$0xf]
        %v891 = vld [vmem:[#allocation12 + $0x3c] sm:$0xff]
        %v892 = vld [vmem:[#allocation12 + $0x44] sm:$0xf]
        %v893 = vld [vmem:[#allocation12 + $0x48] sm:$0xff]
        %v894 = vld [vmem:[#allocation12 + $0x50] sm:$0xf]
        %v895 = vld [vmem:[#allocation12 + $0x54] sm:$0xff]
        %v896 = vld [vmem:[#allocation12 + $0x5c] sm:$0xf]
        %v897 = vld [vmem:[#allocation12 + $0x60] sm:$0xff]
        %v898 = vld [vmem:[#allocation12 + $0x68] sm:$0xf]
        %v899 = vld [vmem:[#allocation12 + $0x6c] sm:$0xff]
        %v900 = vld [vmem:[#allocation12 + $0x74] sm:$0xf]
        %v901 = vld [vmem:[#allocation12 + $0x78] sm:$0xff]
        %v902 = vld [vmem:[#allocation12 + $0x80] sm:$0xf]
        %v903 = vld [vmem:[#allocation12 + $0x84] sm:$0xff]
        %v904 = vld [vmem:[#allocation12 + $0x8c] sm:$0xf]
        %v905 = vld [vmem:[#allocation12 + $0x90] sm:$0xff]
        %v906 = vld [vmem:[#allocation12 + $0x98] sm:$0xf]
        %v907 = vld [vmem:[#allocation12 + $0x9c] sm:$0xff]
        %v908 = vld [vmem:[#allocation12 + $0xa4] sm:$0xf]
        %v909 = vld [vmem:[#allocation12 + $0xa8] sm:$0xff]
        %v910 = vld [vmem:[#allocation12 + $0xb0] sm:$0xf]
        %v911 = vld [vmem:[#allocation12 + $0xb4] sm:$0xff]
        %v912 = vld [vmem:[#allocation12 + $0xbc] sm:$0xf]
        %v913 = vld [vmem:[%s7] sm:$0x7]
        %v914 = vld [vmem:[%s525] sm:$0xff]
        %v915 = vpack.c.bf16 %v914, %v914
        %v917 = vlaneseq
        %v918 = vshrl.u32 %v917, 7
        %v919 = vsub.s32 0, %v918
        %v920 = vrot.slane %v913, %v919
        %v921 = vlaneseq
        %v922 = vshrl.u32 %v921, 7
        %v923 = vsub.s32 1, %v922
        %v924 = vrot.slane %v913, %v923
        %v925 = vlaneseq
        %v926 = vshrl.u32 %v925, 7
        %v927 = vsub.s32 2, %v926
        %v928 = vrot.slane %v913, %v927
        %v964 = vunpack.c.l.b16 %v881
        %v965 = vunpack.c.h.b16 %v881
        %v966 = vunpack.c.l.b16 %v882
        %v967 = vunpack.c.l.b16 %v883
        %v968 = vunpack.c.h.b16 %v883
        %v969 = vunpack.c.l.b16 %v884
        %v970 = vunpack.c.l.b16 %v885
        %v971 = vunpack.c.h.b16 %v885
        %v972 = vunpack.c.l.b16 %v886
        %v973 = vunpack.c.l.b16 %v887
        %v974 = vunpack.c.h.b16 %v887
        %v975 = vunpack.c.l.b16 %v888
        %v976 = vunpack.c.l.b16 %v889
        %v977 = vunpack.c.h.b16 %v889
        %v978 = vunpack.c.l.b16 %v890
        %v979 = vunpack.c.l.b16 %v891
        %v980 = vunpack.c.h.b16 %v891
        %v981 = vunpack.c.l.b16 %v892
        %v982 = vunpack.c.l.b16 %v893
        %v983 = vunpack.c.h.b16 %v893
        %v984 = vunpack.c.l.b16 %v894
        %v985 = vunpack.c.l.b16 %v895
        %v986 = vunpack.c.h.b16 %v895
        %v987 = vunpack.c.l.b16 %v896
        %v988 = vunpack.c.l.b16 %v897
        %v989 = vunpack.c.h.b16 %v897
        %v990 = vunpack.c.l.b16 %v898
        %v991 = vunpack.c.l.b16 %v899
        %v992 = vunpack.c.h.b16 %v899
        %v993 = vunpack.c.l.b16 %v900
        %v994 = vunpack.c.l.b16 %v901
        %v995 = vunpack.c.h.b16 %v901
        %v996 = vunpack.c.l.b16 %v902
        %v997 = vunpack.c.l.b16 %v903
        %v998 = vunpack.c.h.b16 %v903
        %v999 = vunpack.c.l.b16 %v904
        %v1000 = vunpack.c.l.b16 %v905
        %v1001 = vunpack.c.h.b16 %v905
        %v1002 = vunpack.c.l.b16 %v906
        %v1003 = vunpack.c.l.b16 %v907
        %v1004 = vunpack.c.h.b16 %v907
        %v1005 = vunpack.c.l.b16 %v908
        %v1006 = vunpack.c.l.b16 %v909
        %v1007 = vunpack.c.h.b16 %v909
        %v1008 = vunpack.c.l.b16 %v910
        %v1009 = vunpack.c.l.b16 %v911
        %v1010 = vunpack.c.h.b16 %v911
        %v1011 = vunpack.c.l.b16 %v912
        %v1012 = vpack.c.b16 %v967, %v964
        %v1013 = vpack.c.b16 %v968, %v965
        %v1014 = vpack.c.b16 %v969, %v966
        %v1015 = vpack.c.b16 %v973, %v970
        %v1016 = vpack.c.b16 %v974, %v971
        %v1017 = vpack.c.b16 %v975, %v972
        %v1018 = vpack.c.b16 %v979, %v976
        %v1019 = vpack.c.b16 %v980, %v977
        %v1020 = vpack.c.b16 %v981, %v978
        %v1021 = vpack.c.b16 %v985, %v982
        %v1022 = vpack.c.b16 %v986, %v983
        %v1023 = vpack.c.b16 %v987, %v984
        %v1024 = vpack.c.b16 %v991, %v988
        %v1025 = vpack.c.b16 %v992, %v989
        %v1026 = vpack.c.b16 %v993, %v990
        %v1027 = vpack.c.b16 %v997, %v994
        %v1028 = vpack.c.b16 %v998, %v995
        %v1029 = vpack.c.b16 %v999, %v996
        %v1030 = vpack.c.b16 %v1003, %v1000
        %v1031 = vpack.c.b16 %v1004, %v1001
        %v1032 = vpack.c.b16 %v1005, %v1002
        %v1033 = vpack.c.b16 %v1009, %v1006
        %v1034 = vpack.c.b16 %v1010, %v1007
        %v1035 = vpack.c.b16 %v1011, %v1008
        %1060 = vmatprep.subr.bf16.mxu0 %v1013
        %1061 = vmatpush1.bf16.msra.mxu0 %v1012
        %1062 = vmatprep.subr.bf16.mxu0 %v1016
        %1063 = vmatpush1.bf16.msra.mxu0 %v1015
        %1064 = vmatprep.subr.bf16.mxu0 %v1019
        %1065 = vmatpush1.bf16.msra.mxu0 %v1018
        %1066 = vmatprep.subr.bf16.mxu0 %v1022
        %1067 = vmatpush1.bf16.msra.mxu0 %v1021
        %1068 = vmatprep.subr.bf16.mxu0 %v1025
        %1069 = vmatpush1.bf16.msra.mxu0 %v1024
        %1070 = vmatprep.subr.bf16.mxu0 %v1028
        %1071 = vmatpush1.bf16.msra.mxu0 %v1027
        %1072 = vmatprep.subr.bf16.mxu0 %v1031
        %1073 = vmatpush1.bf16.msra.mxu0 %v1030
        %1074 = vmatprep.subr.bf16.mxu0 %v1034
        %1075 = vmatpush1.bf16.msra.mxu0 %v1033
        %1076 = vmatprep.subr.bf16.mxu0 0
        %1077 = vmatpush1.bf16.msra.mxu0 0
        %1078 = vmatprep.subr.bf16.mxu0 0
        %1079 = vmatpush1.bf16.msra.mxu0 0
        %1080 = vmatprep.subr.bf16.mxu0 0
        %1081 = vmatpush1.bf16.msra.mxu0 0
        %1082 = vmatprep.subr.bf16.mxu0 0
        %1083 = vmatpush1.bf16.msra.mxu0 0
        %1084 = vmatprep.subr.bf16.mxu0 0
        %1085 = vmatpush1.bf16.msra.mxu0 0
        %1086 = vmatprep.subr.bf16.mxu0 0
        %1087 = vmatpush1.bf16.msra.mxu0 0
        %1088 = vmatprep.subr.bf16.mxu0 0
        %1089 = vmatpush1.bf16.msra.mxu0 0
        %1090 = vmatprep.subr.bf16.mxu0 0
        %1091 = vmatpush1.bf16.msra.mxu0 0
        %1092 = vmatprep.mubr.bf16.mxu0 0
        %1093 = vmatmul.mubr.bf16.gmra.mrb[0].mxu0 %v915
        %v1094 = vpop.f32.mrb[0].mxu0
        %v1095 = vadd.f32 %v920, %v1094
        %v1096 = vpop.f32.mrb[0].mxu0
        %v1097 = vadd.f32 %v924, %v1096
        %v1098 = vpop.f32.mrb[0].mxu0
        %v1099 = vpop.f32.mrb[0].mxu0
        %1100 = vdwg.mxu0
        %1101 = vmatprep.subr.bf16.mxu0 0
        %1102 = vmatpush1.bf16.msra.mxu0 %v1014
        %1103 = vmatprep.subr.bf16.mxu0 0
        %1104 = vmatpush1.bf16.msra.mxu0 %v1017
        %1105 = vmatprep.subr.bf16.mxu0 0
        %1106 = vmatpush1.bf16.msra.mxu0 %v1020
        %1107 = vmatprep.subr.bf16.mxu0 0
        %1108 = vmatpush1.bf16.msra.mxu0 %v1023
        %1109 = vmatprep.subr.bf16.mxu0 0
        %1110 = vmatpush1.bf16.msra.mxu0 %v1026
        %1111 = vmatprep.subr.bf16.mxu0 0
        %1112 = vmatpush1.bf16.msra.mxu0 %v1029
        %1113 = vmatprep.subr.bf16.mxu0 0
        %1114 = vmatpush1.bf16.msra.mxu0 %v1032
        %1115 = vmatprep.subr.bf16.mxu0 0
        %1116 = vmatpush1.bf16.msra.mxu0 %v1035
        %1117 = vmatprep.subr.bf16.mxu0 0
        %1118 = vmatpush1.bf16.msra.mxu0 0
        %1119 = vmatprep.subr.bf16.mxu0 0
        %1120 = vmatpush1.bf16.msra.mxu0 0
        %1121 = vmatprep.subr.bf16.mxu0 0
        %1122 = vmatpush1.bf16.msra.mxu0 0
        %1123 = vmatprep.subr.bf16.mxu0 0
        %1124 = vmatpush1.bf16.msra.mxu0 0
        %1125 = vmatprep.subr.bf16.mxu0 0
        %1126 = vmatpush1.bf16.msra.mxu0 0
        %1127 = vmatprep.subr.bf16.mxu0 0
        %1128 = vmatpush1.bf16.msra.mxu0 0
        %1129 = vmatprep.subr.bf16.mxu0 0
        %1130 = vmatpush1.bf16.msra.mxu0 0
        %1131 = vmatprep.subr.bf16.mxu0 0
        %1132 = vmatpush1.bf16.msra.mxu0 0
        %1133 = vmatprep.mubr.bf16.mxu0 0
        %1134 = vmatmul.mubr.bf16.gmra.mrb[0].mxu0 %v915
        %v1135 = vpop.f32.mrb[0].mxu0
        %v1136 = vadd.f32 %v928, %v1135
        %v1137 = vpop.f32.mrb[0].mxu0
        %v1138 = vpop.f32.mrb[0].mxu0
        %v1139 = vpop.f32.mrb[0].mxu0
        %1140 = vdwg.mxu0
        %v1141 = vld [vmem:[#allocation2] sm:$0xff]
        %v1142 = vld [vmem:[#allocation2 + $0x8] sm:$0xff]
        %v1143 = vld [vmem:[#allocation2 + $0x10] sm:$0xff]
        %v1144 = vadd.f32 %v1141, %v1095
        %v1145 = vxor.u32 %v1144, 2147483648
        %v1146 = vmul.f32 %v1145, 1.442695
        %v1147 = vpow.pop %v1146
        %v1148 = vadd.f32 %v1147, 1.0
        %v1149 = vrcp.pop %v1148
        %v1150 = vmul.f32 1.0, %v1149
        %v1151 = vadd.f32 %v1142, %v1097
        %v1152 = vxor.u32 %v1151, 2147483648
        %v1153 = vmul.f32 %v1152, 1.442695
        %v1154 = vpow.pop %v1153
        %v1155 = vadd.f32 %v1154, 1.0
        %v1156 = vrcp.pop %v1155
        %v1157 = vmul.f32 1.0, %v1156
        %v1158 = vmul.f32 %v1150, %v1136
        %v1159 = vadd.f32 %v1143, %v1158
        %v1160 = vtanh.pop %v1159
        %v1161 = vsub.f32 1.0, %v1157
        %v1162 = vmul.f32 %v1161, %v1160
        %v1163 = vmul.f32 %v1157, %v914
        %v1164 = vadd.f32 %v1162, %v1163
        %1165 = vst [vmem:[#allocation3] sm:$0xff] %v1164
        %1166 = vst [vmem:[%s525] sm:$0xff] %v1164
        %v1167 = vld [vmem:[#allocation3] sm:$0xff]
        %v1168 = vpack.c.bf16 %v1167, %v1167
        %v1169 = vld [vmem:[#allocation13] sm:$0xff]
        %v1170 = vld [vmem:[#allocation13 + $0x8] sm:$0xff]
        %v1171 = vld [vmem:[#allocation13 + $0x10] sm:$0xff]
        %v1172 = vld [vmem:[#allocation13 + $0x18] sm:$0xff]
        %v1173 = vld [vmem:[#allocation13 + $0x20] sm:$0xff]
        %v1174 = vld [vmem:[#allocation13 + $0x28] sm:$0xff]
        %v1175 = vld [vmem:[#allocation13 + $0x30] sm:$0xff]
        %v1176 = vld [vmem:[#allocation13 + $0x38] sm:$0xff]
        %v1177 = vld [vmem:[#allocation13 + $0x40] sm:$0xff]
        %v1178 = vld [vmem:[#allocation13 + $0x48] sm:$0xff]
        %v1179 = vld [vmem:[#allocation13 + $0x50] sm:$0xff]
        %v1180 = vld [vmem:[#allocation13 + $0x58] sm:$0xff]
        %v1181 = vld [vmem:[#allocation13 + $0x60] sm:$0xff]
        %v1182 = vld [vmem:[#allocation13 + $0x68] sm:$0xff]
        %v1183 = vld [vmem:[#allocation13 + $0x70] sm:$0xff]
        %v1184 = vld [vmem:[#allocation13 + $0x78] sm:$0xff]
        %v1185 = vld [vmem:[%s9] sm:$0x3]
        %v1187 = vlaneseq
        %v1188 = vshrl.u32 %v1187, 7
        %v1189 = vsub.s32 0, %v1188
        %v1190 = vrot.slane %v1185, %v1189
        %v1191 = vlaneseq
        %v1192 = vshrl.u32 %v1191, 7
        %v1193 = vsub.s32 1, %v1192
        %v1194 = vrot.slane %v1185, %v1193
        %v1213 = vunpack.c.l.b16 %v1169
        %v1214 = vunpack.c.h.b16 %v1169
        %v1215 = vunpack.c.l.b16 %v1170
        %v1216 = vunpack.c.h.b16 %v1170
        %v1217 = vunpack.c.l.b16 %v1171
        %v1218 = vunpack.c.h.b16 %v1171
        %v1219 = vunpack.c.l.b16 %v1172
        %v1220 = vunpack.c.h.b16 %v1172
        %v1221 = vunpack.c.l.b16 %v1173
        %v1222 = vunpack.c.h.b16 %v1173
        %v1223 = vunpack.c.l.b16 %v1174
        %v1224 = vunpack.c.h.b16 %v1174
        %v1225 = vunpack.c.l.b16 %v1175
        %v1226 = vunpack.c.h.b16 %v1175
        %v1227 = vunpack.c.l.b16 %v1176
        %v1228 = vunpack.c.h.b16 %v1176
        %v1229 = vunpack.c.l.b16 %v1177
        %v1230 = vunpack.c.h.b16 %v1177
        %v1231 = vunpack.c.l.b16 %v1178
        %v1232 = vunpack.c.h.b16 %v1178
        %v1233 = vunpack.c.l.b16 %v1179
        %v1234 = vunpack.c.h.b16 %v1179
        %v1235 = vunpack.c.l.b16 %v1180
        %v1236 = vunpack.c.h.b16 %v1180
        %v1237 = vunpack.c.l.b16 %v1181
        %v1238 = vunpack.c.h.b16 %v1181
        %v1239 = vunpack.c.l.b16 %v1182
        %v1240 = vunpack.c.h.b16 %v1182
        %v1241 = vunpack.c.l.b16 %v1183
        %v1242 = vunpack.c.h.b16 %v1183
        %v1243 = vunpack.c.l.b16 %v1184
        %v1244 = vunpack.c.h.b16 %v1184
        %v1245 = vpack.c.b16 %v1215, %v1213
        %v1246 = vpack.c.b16 %v1216, %v1214
        %v1247 = vpack.c.b16 %v1219, %v1217
        %v1248 = vpack.c.b16 %v1220, %v1218
        %v1249 = vpack.c.b16 %v1223, %v1221
        %v1250 = vpack.c.b16 %v1224, %v1222
        %v1251 = vpack.c.b16 %v1227, %v1225
        %v1252 = vpack.c.b16 %v1228, %v1226
        %v1253 = vpack.c.b16 %v1231, %v1229
        %v1254 = vpack.c.b16 %v1232, %v1230
        %v1255 = vpack.c.b16 %v1235, %v1233
        %v1256 = vpack.c.b16 %v1236, %v1234
        %v1257 = vpack.c.b16 %v1239, %v1237
        %v1258 = vpack.c.b16 %v1240, %v1238
        %v1259 = vpack.c.b16 %v1243, %v1241
        %v1260 = vpack.c.b16 %v1244, %v1242
        %1277 = vmatprep.subr.bf16.mxu0 %v1246
        %1278 = vmatpush1.bf16.msra.mxu0 %v1245
        %1279 = vmatprep.subr.bf16.mxu0 %v1248
        %1280 = vmatpush1.bf16.msra.mxu0 %v1247
        %1281 = vmatprep.subr.bf16.mxu0 %v1250
        %1282 = vmatpush1.bf16.msra.mxu0 %v1249
        %1283 = vmatprep.subr.bf16.mxu0 %v1252
        %1284 = vmatpush1.bf16.msra.mxu0 %v1251
        %1285 = vmatprep.subr.bf16.mxu0 %v1254
        %1286 = vmatpush1.bf16.msra.mxu0 %v1253
        %1287 = vmatprep.subr.bf16.mxu0 %v1256
        %1288 = vmatpush1.bf16.msra.mxu0 %v1255
        %1289 = vmatprep.subr.bf16.mxu0 %v1258
        %1290 = vmatpush1.bf16.msra.mxu0 %v1257
        %1291 = vmatprep.subr.bf16.mxu0 %v1260
        %1292 = vmatpush1.bf16.msra.mxu0 %v1259
        %1293 = vmatprep.subr.bf16.mxu0 0
        %1294 = vmatpush1.bf16.msra.mxu0 0
        %1295 = vmatprep.subr.bf16.mxu0 0
        %1296 = vmatpush1.bf16.msra.mxu0 0
        %1297 = vmatprep.subr.bf16.mxu0 0
        %1298 = vmatpush1.bf16.msra.mxu0 0
        %1299 = vmatprep.subr.bf16.mxu0 0
        %1300 = vmatpush1.bf16.msra.mxu0 0
        %1301 = vmatprep.subr.bf16.mxu0 0
        %1302 = vmatpush1.bf16.msra.mxu0 0
        %1303 = vmatprep.subr.bf16.mxu0 0
        %1304 = vmatpush1.bf16.msra.mxu0 0
        %1305 = vmatprep.subr.bf16.mxu0 0
        %1306 = vmatpush1.bf16.msra.mxu0 0
        %1307 = vmatprep.subr.bf16.mxu0 0
        %1308 = vmatpush1.bf16.msra.mxu0 0
        %1309 = vmatprep.mubr.bf16.mxu0 0
        %1310 = vmatmul.mubr.bf16.gmra.mrb[0].mxu0 %v1168
        %v1311 = vpop.f32.mrb[0].mxu0
        %v1312 = vadd.f32 %v1190, %v1311
        %v1313 = vpop.f32.mrb[0].mxu0
        %v1314 = vadd.f32 %v1194, %v1313
        %v1315 = vpop.f32.mrb[0].mxu0
        %v1316 = vpop.f32.mrb[0].mxu0
        %1317 = vdwg.mxu0
        %1318 = vst [vmem:[%s518] sm:$0xff] %v1312
        %1319 = vst [vmem:[%s518 + $0x8] sm:$0xff] %v1314
        %s1320 = sand.u32 %s281, 1
        %s1321 = scalar_lea.sflag [#allocation6], %s1320
        %s1322 = sand.u32 %s281, 1
        %s1323 = smul.addr %s1322, 16
        %s1324 = scalar_lea.vmem [#allocation15], %s1323
        %s1325 = sand.u32 %s307, 1
        %s1326 = scalar_lea.sflag [#allocation17], %s1325
        %s1327 = sand.u32 %s307, 1
        %s1328 = smul.addr %s1327, 8
        %s1329 = scalar_lea.vmem [#allocation16], %s1328
        // Predicated region
        $region89: #{tpu_custom_call.1} parent=59 // pred_check
          %p1330 = pneg %p291
        $region90: #{tpu_custom_call.1} parent=59 // pred_check_branch
          %1332 = sbr.rel (%p1330) target = $region92
        $region91: #{tpu_custom_call.1} parent=59 // pred_region
          %s1334 = ssub.s32 256, 256
          %1335 = vsyncadd %s1321, %s1334
          %s1336 = smul.addr %s41, 2
          %s1337 = smul.addr %s42, 4
          %s1338 = sadd.s32 %s1336, %s1337
          %s1339 = smul.addr %s1338, 128
          %s1340 = scalar_lea.hbm %s10, %s1339
          %s1342 = sshll.u32 %s1324, 4
          %s1343 = int_to_ptr.vmem [resolvable:$true] %s1342
          %1345 = dma.vmem_to_hbm [thread:$0]  %s1343, 256, %s1340, %s1321
        $region92: #{tpu_custom_call.1} parent=59 // pred_fallthru
          _
        // Predicated region
        $region93: #{tpu_custom_call.1} parent=59 // pred_check
          %p1346 = pneg %p317
        $region94: #{tpu_custom_call.1} parent=59 // pred_check_branch
          %1348 = sbr.rel (%p1346) target = $region96
        $region95: #{tpu_custom_call.1} parent=59 // pred_region
          %s1350 = ssub.s32 128, 128
          %1351 = vsyncadd %s1326, %s1350
          %s1352 = smul.addr %s41, 128
          %s1353 = scalar_lea.hbm %s11, %s1352
          %s1355 = sshll.u32 %s1329, 4
          %s1356 = int_to_ptr.vmem [resolvable:$true] %s1355
          %1358 = dma.vmem_to_hbm [thread:$0]  %s1356, 128, %s1353, %s1326
        $region96: #{tpu_custom_call.1} parent=59 // pred_fallthru
          _
      $region60: #{tpu_custom_call.1} parent=5 // pred_fallthru
        _
      %p1359 = scmp.le.s32.totalorder 2, %s32
      // Predicated region
      $region97: #{tpu_custom_call.1} parent=5 // pred_check
        %p1360 = pneg %p1359
      $region98: #{tpu_custom_call.1} parent=5 // pred_check_branch
        %1362 = sbr.rel (%p1360) target = $region100
      $region99: #{tpu_custom_call.1} parent=5 // pred_region
        %s1363 = ssub.s32 %s32, 2
        // Predicated region
        $region101: #{tpu_custom_call.1} parent=99 // pred_check
          %p1364 = pneg %p297
        $region102: #{tpu_custom_call.1} parent=99 // pred_check_branch
          %1366 = sbr.rel (%p1364) target = $region104
        $region103: #{tpu_custom_call.1} parent=99 // pred_region
          %s1367 = sand.u32 %s282, 1
          %s1368 = scalar_lea.sflag [#allocation6], %s1367
          %s1369 = sand.u32 %s282, 1
          %s1370 = smul.addr %s1369, 16
          %s1371 = scalar_lea.vmem [#allocation15], %s1370
          %1372 = dma.done %s1368, 256
        $region104: #{tpu_custom_call.1} parent=99 // pred_fallthru
          _
        // Predicated region
        $region105: #{tpu_custom_call.1} parent=99 // pred_check
          %p1373 = pneg %p323
        $region106: #{tpu_custom_call.1} parent=99 // pred_check_branch
          %1375 = sbr.rel (%p1373) target = $region108
        $region107: #{tpu_custom_call.1} parent=99 // pred_region
          %s1376 = sand.u32 %s308, 1
          %s1377 = scalar_lea.sflag [#allocation17], %s1376
          %s1378 = sand.u32 %s308, 1
          %s1379 = smul.addr %s1378, 8
          %s1380 = scalar_lea.vmem [#allocation16], %s1379
          %1381 = dma.done %s1377, 128
        $region108: #{tpu_custom_call.1} parent=99 // pred_fallthru
          _
      $region100: #{tpu_custom_call.1} parent=5 // pred_fallthru
        _
    $region6: #{tpu_custom_call.1} parent=1 // loop_footer
      %s36 = sadd.s32 1, %s32
    $region7: #{tpu_custom_call.1} parent=1 // loop_footer_branch
      %31 = sbr.rel target = $region3
    $region8: #{tpu_custom_call.1} parent=1 // loop_exit
      _
    %1382 = vsyncpa [#allocation5], 1
    %s1383 = scalar_lea.sflag [#allocation5], 1
    %1384 = vsyncpa %s1383, 1
    %1385 = vsyncpa [#allocation8], 1
    %s1386 = scalar_lea.sflag [#allocation8], 1
    %1387 = vsyncpa %s1386, 1
    %1388 = vsyncpa [#allocation11], 1
    %1389 = vsyncpa [#allocation14], 1
    %1390 = vsyncpa [#allocation6], 1
    %s1391 = scalar_lea.sflag [#allocation6], 1
    %1392 = vsyncpa %s1391, 1
    %1393 = vsyncpa [#allocation17], 1
    %s1394 = scalar_lea.sflag [#allocation17], 1
    %1395 = vsyncpa %s1394, 1

</llo_original>
